<compile_context>
chip_gen: v7x
topology: tpu7x:2x2x1
jax: 0.10.0
libtpu: 0.0.40
codegen_flags: <defaults>
</compile_context>

<pallas_src>
import functools
import numpy as np
import jax
import jax.numpy as jnp
from jax import lax
from jax.experimental import pallas as pl
from jax.experimental.pallas import tpu as pltpu

SCALE_CROSS = 80.0


def _fusion_kernel(x1_ref, x2_ref, wq_ref, wkv_ref, wvec_ref,
                   y_ref, attn_ref, k_ref, u_ref,
                   *, num_heads, head_dim, dim, scale_total, compute_dtype):
    C, d = dim, head_dim

    # ---- once per batch element (first query tile): project k/v, fold proj ----
    @pl.when(pl.program_id(1) == 0)
    def _():
        kv = jnp.dot(x1_ref[0], wkv_ref[...],
                     preferred_element_type=jnp.float32)          # (M, 2C) f32
        k_ref[...] = kv[:, :C].astype(compute_dtype)              # (M, C)
        # u[:, h] = v_h @ mean_c(Wp)[h-block]  — folds attn@v -> proj -> mean.
        for h in range(num_heads):                                # static unroll
            u_ref[:, h:h + 1] = jnp.dot(
                kv[:, C + h * d:C + (h + 1) * d],                 # v_h (M, d)
                wvec_ref[h * d:(h + 1) * d, :],                   # (d, 1)
                preferred_element_type=jnp.float32)

    # ---- per query tile ----
    q = jnp.dot(x2_ref[0], wq_ref[...],
                preferred_element_type=jnp.float32)               # (tN, C)
    q = (q * scale_total).astype(compute_dtype)                   # fold scale*80 once

    y_acc = jnp.zeros((q.shape[0], 1), jnp.float32)
    for h in range(num_heads):                                    # static unroll
        q_h = q[:, h * d:(h + 1) * d]                             # (tN, d)
        k_h = k_ref[:, h * d:(h + 1) * d]                         # (M, d)
        s = lax.dot_general(q_h, k_h, (((1,), (1,)), ((), ())),
                            preferred_element_type=jnp.float32)   # (tN, M)
        # numerically-stable softmax over the gene axis (f32)
        s_max = jnp.max(s, axis=-1, keepdims=True)
        p = jnp.exp(s - s_max)
        a = p / jnp.sum(p, axis=-1, keepdims=True)                # (tN, M)
        attn_ref[0, h, :, :] = a
        y_acc = y_acc + jnp.dot(a, u_ref[:, h:h + 1],
                                preferred_element_type=jnp.float32)
    y_ref[0] = y_acc                                              # (tN, 1)


def _adaptive_pool_matrix(n_in, n_out):
    """Pooling matrix reproducing torch AdaptiveAvgPool along one axis."""
    p = np.zeros((n_out, n_in), np.float32)
    for i in range(n_out):
        start = (i * n_in) // n_out
        end = -((-(i + 1) * n_in) // n_out)  # ceil((i+1)*n_in / n_out)
        p[i, start:end] = 1.0 / (end - start)
    return jnp.asarray(p)


def _pick_query_tile(n):
    """Largest multiple-of-8 tile <= 256 that divides N, else the full N."""
    for t in (256, 128, 64, 32, 16, 8):
        if n % t == 0:
            return t
    for t in range(min(512, n) - min(512, n) % 8, 7, -8):
        if n % t == 0:
            return t
    return n  # full axis (always a legal block)


def gene_guided_transformer_fusion(x1, x2, params, *, num_patches, num_heads,
                                   qk_scale=None, compute_dtype=jnp.float32):
    B, M, C = x1.shape
    Bn, N, Cn = x2.shape
    assert B == Bn and C == Cn and C % num_heads == 0
    head_dim = C // num_heads
    scale = qk_scale if qk_scale is not None else head_dim ** (-0.5)

    # PyTorch-style weights: q_w (C,C), kv_w (2C,C), proj_w (C,C), proj_b (C,)
    wq_t = params["q_w"].T.astype(compute_dtype)            # (C, C)
    wkv_t = params["kv_w"].T.astype(compute_dtype)           # (C, 2C)  fused k|v
    # Channel-mean of the output projection (the only part of proj the module
    # ever exposes, since gap immediately averages over channels).
    wvec = jnp.mean(params["proj_w"], axis=0).reshape(C, 1).astype(jnp.float32)
    bias_mean = jnp.mean(params["proj_b"]).astype(jnp.float32)

    x1c = x1.astype(compute_dtype)
    x2c = x2.astype(compute_dtype)

    tile_n = _pick_query_tile(N)
    n_tiles = N // tile_n

    kernel = functools.partial(
        _fusion_kernel, num_heads=num_heads, head_dim=head_dim, dim=C,
        scale_total=float(scale) * SCALE_CROSS, compute_dtype=compute_dtype)

    y_rowmean, attn = pl.pallas_call(
        kernel,
        out_shape=(
            jax.ShapeDtypeStruct((B, N, 1), jnp.float32),
            jax.ShapeDtypeStruct((B, num_heads, N, M), jnp.float32),
        ),
        grid_spec=pltpu.PrefetchScalarGridSpec(
            num_scalar_prefetch=0,
            grid=(B, n_tiles),
            in_specs=[
                pl.BlockSpec((1, M, C), lambda b, n: (b, 0, 0)),       # x1 (resident per b)
                pl.BlockSpec((1, tile_n, C), lambda b, n: (b, n, 0)),  # x2 query tile
                pl.BlockSpec((C, C), lambda b, n: (0, 0)),             # wq_t
                pl.BlockSpec((C, 2 * C), lambda b, n: (0, 0)),         # wkv_t (fused)
                pl.BlockSpec((C, 1), lambda b, n: (0, 0)),             # mean_c(Wp)
            ],
            out_specs=[
                pl.BlockSpec((1, tile_n, 1), lambda b, n: (b, n, 0)),
                pl.BlockSpec((1, num_heads, tile_n, M), lambda b, n: (b, 0, n, 0)),
            ],
            scratch_shapes=[
                pltpu.VMEM((M, C), compute_dtype),                     # k (per batch)
                pltpu.VMEM((M, num_heads), jnp.float32),               # u = v_h @ wvec_h
            ],
        ),
        compiler_params=pltpu.CompilerParams(
            dimension_semantics=("parallel", "arbitrary"),
            vmem_limit_bytes=64 * 1024 * 1024),
    )(x1c, x2c, wq_t, wkv_t, wvec)

    # Height part of AdaptiveAvgPool2d((num_patches, 1)): pool N -> num_patches.
    # The pooling rows each sum to 1, so the proj-bias channel mean is added
    # afterwards (exact).
    pool = _adaptive_pool_matrix(N, num_patches)                       # (P, N)
    y = jnp.einsum("pn,bn->bp", pool, y_rowmean[..., 0]) + bias_mean
    return y[..., None], attn


def _reference(x1, x2, params, *, num_patches, num_heads, qk_scale=None):
    """Pure-JAX reference mirroring the PyTorch forward."""
    B, M, C = x1.shape
    _, N, _ = x2.shape
    head_dim = C // num_heads
    scale = qk_scale if qk_scale is not None else head_dim ** (-0.5)

    q = x2 @ params["q_w"].T
    kv = x1 @ params["kv_w"].T                      # (B, M, 2C)
    k, v = kv[..., :C], kv[..., C:]

    q = q.reshape(B, N, num_heads, head_dim).transpose(0, 2, 1, 3)
    k = k.reshape(B, M, num_heads, head_dim).transpose(0, 2, 1, 3)
    v = v.reshape(B, M, num_heads, head_dim).transpose(0, 2, 1, 3)

    attn_pre = jnp.einsum("bhnd,bhmd->bhnm", q, k) * scale * SCALE_CROSS
    attn = jax.nn.softmax(attn_pre, axis=-1)
    x = jnp.einsum("bhnm,bhmd->bhnd", attn, v).transpose(0, 2, 1, 3).reshape(B, N, C)
    x = x @ params["proj_w"].T + params["proj_b"]

    pool = _adaptive_pool_matrix(N, num_patches)
    rowmean = jnp.mean(x, axis=-1)                  # (B, N)
    y = jnp.einsum("pn,bn->bp", pool, rowmean)[..., None]
    return y, attn


if __name__ == "__main__":
    # Small, module-consistent shapes.
    B, M, N, C = 2, 16, 8, 32     # gene tokens M, WSI tokens N, dim C
    NUM_HEADS = 4
    NUM_PATCHES = 4               # gap output height (exercises N -> P binning)

    key = jax.random.PRNGKey(0)
    k1, k2, k3, k4, k5, k6 = jax.random.split(key, 6)

    x1 = jax.random.normal(k1, (B, M, C), jnp.float32)   # gene tokens
    x2 = jax.random.normal(k2, (B, N, C), jnp.float32)   # WSI patch tokens

    params = {
        "q_w": jax.random.normal(k3, (C, C), jnp.float32) * 0.05,
        "kv_w": jax.random.normal(k4, (2 * C, C), jnp.float32) * 0.05,
        "proj_w": jax.random.normal(k5, (C, C), jnp.float32) * 0.05,
        "proj_b": jax.random.normal(k6, (C,), jnp.float32) * 0.05,
    }

    y, attn = gene_guided_transformer_fusion(
        x1, x2, params, num_patches=NUM_PATCHES, num_heads=NUM_HEADS)
    jax.block_until_ready(y)
    jax.block_until_ready(attn)

    y_ref, attn_ref = _reference(
        x1, x2, params, num_patches=NUM_PATCHES, num_heads=NUM_HEADS)

    assert y.shape == (B, NUM_PATCHES, 1)
    assert attn.shape == (B, NUM_HEADS, N, M)
    np.testing.assert_allclose(np.asarray(y), np.asarray(y_ref), rtol=1e-5, atol=1e-5)
    np.testing.assert_allclose(np.asarray(attn), np.asarray(attn_ref), rtol=1e-5, atol=1e-5)

    # TODO(synk): compute_dtype=jnp.bfloat16 enables the bf16 MXU path but changes
    # the numerical contract (would need looser tolerances than the f32 reference).
    print("KERNEL_OK")
</pallas_src>

<mosaic_0001>
module attributes {stable_mosaic.version = 11 : i64} {
  func.func @_fusion_kernel(%arg0: i32, %arg1: i32, %arg2: memref<1x16x32xf32, #tpu.memory_space<vmem>>, %arg3: memref<1x8x32xf32, #tpu.memory_space<vmem>>, %arg4: memref<32x32xf32, #tpu.memory_space<vmem>>, %arg5: memref<32x64xf32, #tpu.memory_space<vmem>>, %arg6: memref<32x1xf32, #tpu.memory_space<vmem>>, %arg7: memref<1x8x1xf32, #tpu.memory_space<vmem>>, %arg8: memref<1x4x8x16xf32, #tpu.memory_space<vmem>>, %arg9: memref<16x32xf32, #tpu.memory_space<vmem>>, %arg10: memref<16x4xf32, #tpu.memory_space<vmem>>) attributes {dimension_semantics = [#tpu.dimension_semantics<parallel>, #tpu.dimension_semantics<arbitrary>], iteration_bounds = array<i64: 2, 1>, scalar_prefetch = 0 : i64, scratch_operands = 2 : i64, tpu.core_type = #tpu.core_type<tc>, window_params = [{transform_indices = @transform_0, window_bounds = array<i64: 1, 16, 32>}, {transform_indices = @transform_1, window_bounds = array<i64: 1, 8, 32>}, {pipeline_mode = #tpu.pipeline_mode<synchronous>, transform_indices = @transform_2, window_bounds = array<i64: 32, 32>}, {pipeline_mode = #tpu.pipeline_mode<synchronous>, transform_indices = @transform_3, window_bounds = array<i64: 32, 64>}, {pipeline_mode = #tpu.pipeline_mode<synchronous>, transform_indices = @transform_4, window_bounds = array<i64: 32, 1>}, {transform_indices = @transform_5, window_bounds = array<i64: 1, 8, 1>}, {transform_indices = @transform_6, window_bounds = array<i64: 1, 4, 8, 16>}]} {
    %c0_i32 = arith.constant 0 : i32
    %0 = arith.cmpi eq, %arg1, %c0_i32 : i32
    %1 = arith.extui %0 : i1 to i32
    %c0_i32_0 = arith.constant 0 : i32
    %2 = arith.cmpi ne, %1, %c0_i32_0 : i32
    scf.if %2 {
      %c0_52 = arith.constant 0 : index
      %c0_53 = arith.constant 0 : index
      %c0_54 = arith.constant 0 : index
      %85 = vector.load %arg2[%c0_52, %c0_53, %c0_54] : memref<1x16x32xf32, #tpu.memory_space<vmem>>, vector<1x16x32xf32>
      %86 = vector.shape_cast %85 : vector<1x16x32xf32> to vector<16x32xf32>
      %c0_55 = arith.constant 0 : index
      %c0_56 = arith.constant 0 : index
      %87 = vector.load %arg5[%c0_55, %c0_56] : memref<32x64xf32, #tpu.memory_space<vmem>>, vector<32x64xf32>
      %cst_57 = arith.constant dense<0.000000e+00> : vector<16x64xf32>
      %88 = tpu.matmul %86, %87, %cst_57 {dimension_numbers = #tpu.dot_dimension_numbers<[1], [0], [0], [1], [0, 0, 1, 1], [], []>} : vector<16x32xf32>, vector<32x64xf32>, vector<16x64xf32> -> vector<16x64xf32>
      %89 = vector.extract_strided_slice %88 {offsets = [0, 0], sizes = [16, 32], strides = [1, 1]} : vector<16x64xf32> to vector<16x32xf32>
      %c0_58 = arith.constant 0 : index
      %c0_59 = arith.constant 0 : index
      %90 = vector.load %arg9[%c0_58, %c0_59] : memref<16x32xf32, #tpu.memory_space<vmem>>, vector<16x32xf32>
      tpu.vector_store %arg9[%c0_58, %c0_59], %89 {strides = array<i32>} : memref<16x32xf32, #tpu.memory_space<vmem>>, vector<16x32xf32>,
      %91 = vector.extract_strided_slice %88 {offsets = [0, 32], sizes = [16, 8], strides = [1, 1]} : vector<16x64xf32> to vector<16x8xf32>
      %c0_60 = arith.constant 0 : index
      %c0_61 = arith.constant 0 : index
      %92 = vector.load %arg6[%c0_60, %c0_61] : memref<32x1xf32, #tpu.memory_space<vmem>>, vector<8x1xf32>
      %cst_62 = arith.constant dense<0.000000e+00> : vector<16x1xf32>
      %93 = tpu.matmul %91, %92, %cst_62 {dimension_numbers = #tpu.dot_dimension_numbers<[1], [0], [0], [1], [0, 0, 1, 1], [], []>} : vector<16x8xf32>, vector<8x1xf32>, vector<16x1xf32> -> vector<16x1xf32>
      %c0_63 = arith.constant 0 : index
      %c0_64 = arith.constant 0 : index
      %94 = vector.load %arg10[%c0_63, %c0_64] : memref<16x4xf32, #tpu.memory_space<vmem>>, vector<16x1xf32>
      tpu.vector_store %arg10[%c0_63, %c0_64], %93 {strides = array<i32>} : memref<16x4xf32, #tpu.memory_space<vmem>>, vector<16x1xf32>,
      %95 = vector.extract_strided_slice %88 {offsets = [0, 40], sizes = [16, 8], strides = [1, 1]} : vector<16x64xf32> to vector<16x8xf32>
      %c8_65 = arith.constant 8 : index
      %c0_66 = arith.constant 0 : index
      %96 = vector.load %arg6[%c8_65, %c0_66] : memref<32x1xf32, #tpu.memory_space<vmem>>, vector<8x1xf32>
      %cst_67 = arith.constant dense<0.000000e+00> : vector<16x1xf32>
      %97 = tpu.matmul %95, %96, %cst_67 {dimension_numbers = #tpu.dot_dimension_numbers<[1], [0], [0], [1], [0, 0, 1, 1], [], []>} : vector<16x8xf32>, vector<8x1xf32>, vector<16x1xf32> -> vector<16x1xf32>
      %c0_68 = arith.constant 0 : index
      %c1_69 = arith.constant 1 : index
      %98 = vector.load %arg10[%c0_68, %c1_69] : memref<16x4xf32, #tpu.memory_space<vmem>>, vector<16x1xf32>
      tpu.vector_store %arg10[%c0_68, %c1_69], %97 {strides = array<i32>} : memref<16x4xf32, #tpu.memory_space<vmem>>, vector<16x1xf32>,
      %99 = vector.extract_strided_slice %88 {offsets = [0, 48], sizes = [16, 8], strides = [1, 1]} : vector<16x64xf32> to vector<16x8xf32>
      %c16_70 = arith.constant 16 : index
      %c0_71 = arith.constant 0 : index
      %100 = vector.load %arg6[%c16_70, %c0_71] : memref<32x1xf32, #tpu.memory_space<vmem>>, vector<8x1xf32>
      %cst_72 = arith.constant dense<0.000000e+00> : vector<16x1xf32>
      %101 = tpu.matmul %99, %100, %cst_72 {dimension_numbers = #tpu.dot_dimension_numbers<[1], [0], [0], [1], [0, 0, 1, 1], [], []>} : vector<16x8xf32>, vector<8x1xf32>, vector<16x1xf32> -> vector<16x1xf32>
      %c0_73 = arith.constant 0 : index
      %c2_74 = arith.constant 2 : index
      %102 = vector.load %arg10[%c0_73, %c2_74] : memref<16x4xf32, #tpu.memory_space<vmem>>, vector<16x1xf32>
      tpu.vector_store %arg10[%c0_73, %c2_74], %101 {strides = array<i32>} : memref<16x4xf32, #tpu.memory_space<vmem>>, vector<16x1xf32>,
      %103 = vector.extract_strided_slice %88 {offsets = [0, 56], sizes = [16, 8], strides = [1, 1]} : vector<16x64xf32> to vector<16x8xf32>
      %c24_75 = arith.constant 24 : index
      %c0_76 = arith.constant 0 : index
      %104 = vector.load %arg6[%c24_75, %c0_76] : memref<32x1xf32, #tpu.memory_space<vmem>>, vector<8x1xf32>
      %cst_77 = arith.constant dense<0.000000e+00> : vector<16x1xf32>
      %105 = tpu.matmul %103, %104, %cst_77 {dimension_numbers = #tpu.dot_dimension_numbers<[1], [0], [0], [1], [0, 0, 1, 1], [], []>} : vector<16x8xf32>, vector<8x1xf32>, vector<16x1xf32> -> vector<16x1xf32>
      %c0_78 = arith.constant 0 : index
      %c3_79 = arith.constant 3 : index
      %106 = vector.load %arg10[%c0_78, %c3_79] : memref<16x4xf32, #tpu.memory_space<vmem>>, vector<16x1xf32>
      tpu.vector_store %arg10[%c0_78, %c3_79], %105 {strides = array<i32>} : memref<16x4xf32, #tpu.memory_space<vmem>>, vector<16x1xf32>,
    } else {
    }
    %c0 = arith.constant 0 : index
    %c0_1 = arith.constant 0 : index
    %c0_2 = arith.constant 0 : index
    %3 = vector.load %arg3[%c0, %c0_1, %c0_2] : memref<1x8x32xf32, #tpu.memory_space<vmem>>, vector<1x8x32xf32>
    %4 = vector.shape_cast %3 : vector<1x8x32xf32> to vector<8x32xf32>
    %c0_3 = arith.constant 0 : index
    %c0_4 = arith.constant 0 : index
    %5 = vector.load %arg4[%c0_3, %c0_4] : memref<32x32xf32, #tpu.memory_space<vmem>>, vector<32x32xf32>
    %cst = arith.constant dense<0.000000e+00> : vector<8x32xf32>
    %6 = tpu.matmul %4, %5, %cst {dimension_numbers = #tpu.dot_dimension_numbers<[1], [0], [0], [1], [0, 0, 1, 1], [], []>} : vector<8x32xf32>, vector<32x32xf32>, vector<8x32xf32> -> vector<8x32xf32>
    %cst_5 = arith.constant 28.2842712 : f32
    %7 = vector.broadcast %cst_5 : f32 to vector<8x32xf32>
    %8 = arith.mulf %6, %7 : vector<8x32xf32>
    %cst_6 = arith.constant 0.000000e+00 : f32
    %9 = vector.broadcast %cst_6 : f32 to vector<8x1xf32>
    %10 = vector.extract_strided_slice %8 {offsets = [0, 0], sizes = [8, 8], strides = [1, 1]} : vector<8x32xf32> to vector<8x8xf32>
    %c0_7 = arith.constant 0 : index
    %c0_8 = arith.constant 0 : index
    %11 = vector.load %arg9[%c0_7, %c0_8] : memref<16x32xf32, #tpu.memory_space<vmem>>, vector<16x8xf32>
    %cst_9 = arith.constant dense<0.000000e+00> : vector<8x16xf32>
    %12 = tpu.matmul %10, %11, %cst_9 {dimension_numbers = #tpu.dot_dimension_numbers<[1], [1], [0], [0], [0, 0, 1, 0], [], []>} : vector<8x8xf32>, vector<16x8xf32>, vector<8x16xf32> -> vector<8x16xf32>
    %cst_10 = arith.constant dense<0xFF800000> : vector<8xf32>
    %13 = vector.multi_reduction <maximumf>, %12, %cst_10 [1] : vector<8x16xf32> to vector<8xf32>
    %14 = vector.shape_cast %13 : vector<8xf32> to vector<8x1xf32>
    %15 = vector.broadcast %14 : vector<8x1xf32> to vector<8x16xf32>
    %16 = arith.subf %12, %15 : vector<8x16xf32>
    %17 = math.exp %16 : vector<8x16xf32>
    %cst_11 = arith.constant dense<0.000000e+00> : vector<8xf32>
    %18 = vector.multi_reduction <add>, %17, %cst_11 [1] : vector<8x16xf32> to vector<8xf32>
    %19 = vector.shape_cast %18 : vector<8xf32> to vector<8x1xf32>
    %20 = vector.broadcast %19 : vector<8x1xf32> to vector<8x16xf32>
    %21 = arith.divf %17, %20 : vector<8x16xf32>
    %c0_12 = arith.constant 0 : index
    %c0_13 = arith.constant 0 : index
    %c0_14 = arith.constant 0 : index
    %c0_15 = arith.constant 0 : index
    %22 = vector.load %arg8[%c0_12, %c0_13, %c0_14, %c0_15] : memref<1x4x8x16xf32, #tpu.memory_space<vmem>>, vector<1x1x8x16xf32>
    %23 = vector.shape_cast %22 : vector<1x1x8x16xf32> to vector<8x16xf32>
    %24 = vector.shape_cast %21 : vector<8x16xf32> to vector<1x1x8x16xf32>
    tpu.vector_store %arg8[%c0_12, %c0_13, %c0_14, %c0_15], %24 {strides = array<i32>} : memref<1x4x8x16xf32, #tpu.memory_space<vmem>>, vector<1x1x8x16xf32>,
    %c0_16 = arith.constant 0 : index
    %c0_17 = arith.constant 0 : index
    %25 = vector.load %arg10[%c0_16, %c0_17] : memref<16x4xf32, #tpu.memory_space<vmem>>, vector<16x1xf32>
    %cst_18 = arith.constant dense<0.000000e+00> : vector<8x1xf32>
    %26 = tpu.matmul %21, %25, %cst_18 {dimension_numbers = #tpu.dot_dimension_numbers<[1], [0], [0], [1], [0, 0, 1, 1], [], []>} : vector<8x16xf32>, vector<16x1xf32>, vector<8x1xf32> -> vector<8x1xf32>
    %27 = arith.addf %9, %26 : vector<8x1xf32>
    %28 = vector.extract_strided_slice %8 {offsets = [0, 8], sizes = [8, 8], strides = [1, 1]} : vector<8x32xf32> to vector<8x8xf32>
    %c0_19 = arith.constant 0 : index
    %c8 = arith.constant 8 : index
    %29 = vector.load %arg9[%c0_19, %c8] : memref<16x32xf32, #tpu.memory_space<vmem>>, vector<16x8xf32>
    %cst_20 = arith.constant dense<0.000000e+00> : vector<8x16xf32>
    %30 = tpu.matmul %28, %29, %cst_20 {dimension_numbers = #tpu.dot_dimension_numbers<[1], [1], [0], [0], [0, 0, 1, 0], [], []>} : vector<8x8xf32>, vector<16x8xf32>, vector<8x16xf32> -> vector<8x16xf32>
    %cst_21 = arith.constant dense<0xFF800000> : vector<8xf32>
    %31 = vector.multi_reduction <maximumf>, %30, %cst_21 [1] : vector<8x16xf32> to vector<8xf32>
    %32 = vector.shape_cast %31 : vector<8xf32> to vector<8x1xf32>
    %33 = vector.broadcast %32 : vector<8x1xf32> to vector<8x16xf32>
    %34 = arith.subf %30, %33 : vector<8x16xf32>
    %35 = math.exp %34 : vector<8x16xf32>
    %cst_22 = arith.constant dense<0.000000e+00> : vector<8xf32>
    %36 = vector.multi_reduction <add>, %35, %cst_22 [1] : vector<8x16xf32> to vector<8xf32>
    %37 = vector.shape_cast %36 : vector<8xf32> to vector<8x1xf32>
    %38 = vector.broadcast %37 : vector<8x1xf32> to vector<8x16xf32>
    %39 = arith.divf %35, %38 : vector<8x16xf32>
    %c0_23 = arith.constant 0 : index
    %c1 = arith.constant 1 : index
    %c0_24 = arith.constant 0 : index
    %c0_25 = arith.constant 0 : index
    %40 = vector.load %arg8[%c0_23, %c1, %c0_24, %c0_25] : memref<1x4x8x16xf32, #tpu.memory_space<vmem>>, vector<1x1x8x16xf32>
    %41 = vector.shape_cast %40 : vector<1x1x8x16xf32> to vector<8x16xf32>
    %42 = vector.shape_cast %39 : vector<8x16xf32> to vector<1x1x8x16xf32>
    tpu.vector_store %arg8[%c0_23, %c1, %c0_24, %c0_25], %42 {strides = array<i32>} : memref<1x4x8x16xf32, #tpu.memory_space<vmem>>, vector<1x1x8x16xf32>,
    %c0_26 = arith.constant 0 : index
    %c1_27 = arith.constant 1 : index
    %43 = vector.load %arg10[%c0_26, %c1_27] : memref<16x4xf32, #tpu.memory_space<vmem>>, vector<16x1xf32>
    %cst_28 = arith.constant dense<0.000000e+00> : vector<8x1xf32>
    %44 = tpu.matmul %39, %43, %cst_28 {dimension_numbers = #tpu.dot_dimension_numbers<[1], [0], [0], [1], [0, 0, 1, 1], [], []>} : vector<8x16xf32>, vector<16x1xf32>, vector<8x1xf32> -> vector<8x1xf32>
    %45 = arith.addf %27, %44 : vector<8x1xf32>
    %46 = vector.extract_strided_slice %8 {offsets = [0, 16], sizes = [8, 8], strides = [1, 1]} : vector<8x32xf32> to vector<8x8xf32>
    %c0_29 = arith.constant 0 : index
    %c16 = arith.constant 16 : index
    %47 = vector.load %arg9[%c0_29, %c16] : memref<16x32xf32, #tpu.memory_space<vmem>>, vector<16x8xf32>
    %cst_30 = arith.constant dense<0.000000e+00> : vector<8x16xf32>
    %48 = tpu.matmul %46, %47, %cst_30 {dimension_numbers = #tpu.dot_dimension_numbers<[1], [1], [0], [0], [0, 0, 1, 0], [], []>} : vector<8x8xf32>, vector<16x8xf32>, vector<8x16xf32> -> vector<8x16xf32>
    %cst_31 = arith.constant dense<0xFF800000> : vector<8xf32>
    %49 = vector.multi_reduction <maximumf>, %48, %cst_31 [1] : vector<8x16xf32> to vector<8xf32>
    %50 = vector.shape_cast %49 : vector<8xf32> to vector<8x1xf32>
    %51 = vector.broadcast %50 : vector<8x1xf32> to vector<8x16xf32>
    %52 = arith.subf %48, %51 : vector<8x16xf32>
    %53 = math.exp %52 : vector<8x16xf32>
    %cst_32 = arith.constant dense<0.000000e+00> : vector<8xf32>
    %54 = vector.multi_reduction <add>, %53, %cst_32 [1] : vector<8x16xf32> to vector<8xf32>
    %55 = vector.shape_cast %54 : vector<8xf32> to vector<8x1xf32>
    %56 = vector.broadcast %55 : vector<8x1xf32> to vector<8x16xf32>
    %57 = arith.divf %53, %56 : vector<8x16xf32>
    %c0_33 = arith.constant 0 : index
    %c2 = arith.constant 2 : index
    %c0_34 = arith.constant 0 : index
    %c0_35 = arith.constant 0 : index
    %58 = vector.load %arg8[%c0_33, %c2, %c0_34, %c0_35] : memref<1x4x8x16xf32, #tpu.memory_space<vmem>>, vector<1x1x8x16xf32>
    %59 = vector.shape_cast %58 : vector<1x1x8x16xf32> to vector<8x16xf32>
    %60 = vector.shape_cast %57 : vector<8x16xf32> to vector<1x1x8x16xf32>
    tpu.vector_store %arg8[%c0_33, %c2, %c0_34, %c0_35], %60 {strides = array<i32>} : memref<1x4x8x16xf32, #tpu.memory_space<vmem>>, vector<1x1x8x16xf32>,
    %c0_36 = arith.constant 0 : index
    %c2_37 = arith.constant 2 : index
    %61 = vector.load %arg10[%c0_36, %c2_37] : memref<16x4xf32, #tpu.memory_space<vmem>>, vector<16x1xf32>
    %cst_38 = arith.constant dense<0.000000e+00> : vector<8x1xf32>
    %62 = tpu.matmul %57, %61, %cst_38 {dimension_numbers = #tpu.dot_dimension_numbers<[1], [0], [0], [1], [0, 0, 1, 1], [], []>} : vector<8x16xf32>, vector<16x1xf32>, vector<8x1xf32> -> vector<8x1xf32>
    %63 = arith.addf %45, %62 : vector<8x1xf32>
    %64 = vector.extract_strided_slice %8 {offsets = [0, 24], sizes = [8, 8], strides = [1, 1]} : vector<8x32xf32> to vector<8x8xf32>
    %c0_39 = arith.constant 0 : index
    %c24 = arith.constant 24 : index
    %65 = vector.load %arg9[%c0_39, %c24] : memref<16x32xf32, #tpu.memory_space<vmem>>, vector<16x8xf32>
    %cst_40 = arith.constant dense<0.000000e+00> : vector<8x16xf32>
    %66 = tpu.matmul %64, %65, %cst_40 {dimension_numbers = #tpu.dot_dimension_numbers<[1], [1], [0], [0], [0, 0, 1, 0], [], []>} : vector<8x8xf32>, vector<16x8xf32>, vector<8x16xf32> -> vector<8x16xf32>
    %cst_41 = arith.constant dense<0xFF800000> : vector<8xf32>
    %67 = vector.multi_reduction <maximumf>, %66, %cst_41 [1] : vector<8x16xf32> to vector<8xf32>
    %68 = vector.shape_cast %67 : vector<8xf32> to vector<8x1xf32>
    %69 = vector.broadcast %68 : vector<8x1xf32> to vector<8x16xf32>
    %70 = arith.subf %66, %69 : vector<8x16xf32>
    %71 = math.exp %70 : vector<8x16xf32>
    %cst_42 = arith.constant dense<0.000000e+00> : vector<8xf32>
    %72 = vector.multi_reduction <add>, %71, %cst_42 [1] : vector<8x16xf32> to vector<8xf32>
    %73 = vector.shape_cast %72 : vector<8xf32> to vector<8x1xf32>
    %74 = vector.broadcast %73 : vector<8x1xf32> to vector<8x16xf32>
    %75 = arith.divf %71, %74 : vector<8x16xf32>
    %c0_43 = arith.constant 0 : index
    %c3 = arith.constant 3 : index
    %c0_44 = arith.constant 0 : index
    %c0_45 = arith.constant 0 : index
    %76 = vector.load %arg8[%c0_43, %c3, %c0_44, %c0_45] : memref<1x4x8x16xf32, #tpu.memory_space<vmem>>, vector<1x1x8x16xf32>
    %77 = vector.shape_cast %76 : vector<1x1x8x16xf32> to vector<8x16xf32>
    %78 = vector.shape_cast %75 : vector<8x16xf32> to vector<1x1x8x16xf32>
    tpu.vector_store %arg8[%c0_43, %c3, %c0_44, %c0_45], %78 {strides = array<i32>} : memref<1x4x8x16xf32, #tpu.memory_space<vmem>>, vector<1x1x8x16xf32>,
    %c0_46 = arith.constant 0 : index
    %c3_47 = arith.constant 3 : index
    %79 = vector.load %arg10[%c0_46, %c3_47] : memref<16x4xf32, #tpu.memory_space<vmem>>, vector<16x1xf32>
    %cst_48 = arith.constant dense<0.000000e+00> : vector<8x1xf32>
    %80 = tpu.matmul %75, %79, %cst_48 {dimension_numbers = #tpu.dot_dimension_numbers<[1], [0], [0], [1], [0, 0, 1, 1], [], []>} : vector<8x16xf32>, vector<16x1xf32>, vector<8x1xf32> -> vector<8x1xf32>
    %81 = arith.addf %63, %80 : vector<8x1xf32>
    %c0_49 = arith.constant 0 : index
    %c0_50 = arith.constant 0 : index
    %c0_51 = arith.constant 0 : index
    %82 = vector.load %arg7[%c0_49, %c0_50, %c0_51] : memref<1x8x1xf32, #tpu.memory_space<vmem>>, vector<1x8x1xf32>
    %83 = vector.shape_cast %82 : vector<1x8x1xf32> to vector<8x1xf32>
    %84 = vector.shape_cast %81 : vector<8x1xf32> to vector<1x8x1xf32>
    tpu.vector_store %arg7[%c0_49, %c0_50, %c0_51], %84 {strides = array<i32>} : memref<1x8x1xf32, #tpu.memory_space<vmem>>, vector<1x8x1xf32>,
    return
  }
  func.func @transform_0(%arg0: i32, %arg1: i32) -> (i32, i32, i32) {
    %c0_i32 = arith.constant 0 : i32
    %c0_i32_0 = arith.constant 0 : i32
    %c0_i32_1 = arith.constant 0 : i32
    return %arg0, %c0_i32, %c0_i32_0 : i32, i32, i32
  }
  func.func @transform_1(%arg0: i32, %arg1: i32) -> (i32, i32, i32) {
    %c0_i32 = arith.constant 0 : i32
    %c0_i32_0 = arith.constant 0 : i32
    return %arg0, %arg1, %c0_i32 : i32, i32, i32
  }
  func.func @transform_2(%arg0: i32, %arg1: i32) -> (i32, i32) {
    %c0_i32 = arith.constant 0 : i32
    %c0_i32_0 = arith.constant 0 : i32
    %c0_i32_1 = arith.constant 0 : i32
    return %c0_i32, %c0_i32_0 : i32, i32
  }
  func.func @transform_3(%arg0: i32, %arg1: i32) -> (i32, i32) {
    %c0_i32 = arith.constant 0 : i32
    %c0_i32_0 = arith.constant 0 : i32
    %c0_i32_1 = arith.constant 0 : i32
    return %c0_i32, %c0_i32_0 : i32, i32
  }
  func.func @transform_4(%arg0: i32, %arg1: i32) -> (i32, i32) {
    %c0_i32 = arith.constant 0 : i32
    %c0_i32_0 = arith.constant 0 : i32
    %c0_i32_1 = arith.constant 0 : i32
    return %c0_i32, %c0_i32_0 : i32, i32
  }
  func.func @transform_5(%arg0: i32, %arg1: i32) -> (i32, i32, i32) {
    %c0_i32 = arith.constant 0 : i32
    %c0_i32_0 = arith.constant 0 : i32
    return %arg0, %arg1, %c0_i32 : i32, i32, i32
  }
  func.func @transform_6(%arg0: i32, %arg1: i32) -> (i32, i32, i32, i32) {
    %c0_i32 = arith.constant 0 : i32
    %c0_i32_0 = arith.constant 0 : i32
    %c0_i32_1 = arith.constant 0 : i32
    return %arg0, %c0_i32, %arg1, %c0_i32_0 : i32, i32, i32, i32
  }
}

</mosaic_0001>

<llo_original>
// kernel: tpu_custom_call.1
$region0: #{tpu_custom_call.1}
  #allocation0 [shape = 'u32[]', space=smem, size = 0x4, offset = 0x4, fixed_abs, tag = 'smem constant byte address 0x4 - core index']
  #allocation1 [shape = 'u32[144,128]{1,0:T(1,128)}', space=vmem, size = 0x12000, scoped, tag = 'internal scratch']
  #allocation2 [shape = 'f32[16,32]{1,0:T(8,128)}', space=vmem, size = 0x2000, scoped, tag = 'scratch operand']
  #allocation3 [shape = 'f32[16,4]{1,0:T(8,128)}', space=vmem, size = 0x2000, scoped, tag = 'scratch operand']
  %s0 = inlined_call_operand.hbm [shape: f32[2,16,32], index: 0, kind: input, shape index: {}]
  %s1 = inlined_call_operand.hbm [shape: f32[2,8,32], index: 1, kind: input, shape index: {}]
  %s2 = inlined_call_operand.hbm [shape: f32[32,32], index: 2, kind: input, shape index: {}]
  %s3 = inlined_call_operand.hbm [shape: f32[32,64], index: 3, kind: input, shape index: {}]
  %s4 = inlined_call_operand.hbm [shape: f32[32,1], index: 4, kind: input, shape index: {}]
  %s5 = inlined_call_operand.hbm [shape: f32[2,8,1], index: 5, kind: output, shape index: {0}]
  %s6 = inlined_call_operand.hbm [shape: f32[2,4,8,16], index: 6, kind: output, shape index: {1}]
  %7 = xla_tuple %s5, %s6
  %s8 = sld [smem:[#allocation0]]
  $region85: #{tpu_custom_call.1} parent=0
    _
  %s10 = ssub.s32 1, %s8
  %s11 = scalar_select 0, %s10, %s8
  $region1: #{tpu_custom_call.1} parent=0
    #allocation4 [shape = 'u8[16384]{0}', space=vmem, size = 0x4000, scoped, tag = 'input window, operand 0']
    #allocation5 [shape = 's32[2]{0}', space=sflag, size = 0x8, scoped, tag = 'scoped memory for tpu_custom_call.1']
    #allocation6 [shape = 's32[2]{0}', space=sflag, size = 0x8, scoped, tag = 'scoped memory for tpu_custom_call.1']
    #allocation7 [shape = 'u8[8192]{0}', space=vmem, size = 0x2000, scoped, tag = 'input window, operand 1']
    #allocation8 [shape = 's32[2]{0}', space=sflag, size = 0x8, scoped, tag = 'scoped memory for tpu_custom_call.1']
    #allocation9 [shape = 'u8[16384]{0}', space=vmem, size = 0x4000, scoped, tag = 'input window, operand 2, single buffered']
    #allocation10 [shape = 'u8[16384]{0}', space=vmem, size = 0x4000, scoped, tag = 'input window, operand 3, single buffered']
    #allocation11 [shape = 's32[1]{0}', space=sflag, size = 0x4, scoped, tag = 'scoped memory for tpu_custom_call.1']
    #allocation12 [shape = 'u8[16384]{0}', space=vmem, size = 0x4000, scoped, tag = 'input window, operand 4, single buffered']
    #allocation13 [shape = 'u8[8192]{0}', space=vmem, size = 0x2000, scoped, tag = 'output window, operand 0']
    #allocation14 [shape = 'u8[32768]{0}', space=vmem, size = 0x8000, scoped, tag = 'output window, operand 1']
    #allocation15 [shape = 's32[2]{0}', space=sflag, size = 0x8, scoped, tag = 'scoped memory for tpu_custom_call.1']
    %12 = vsyncpa [#allocation5], 0
    %s13 = scalar_lea.sflag [#allocation5], 1
    %14 = vsyncpa %s13, 0
    %15 = vsyncpa [#allocation8], 0
    %s16 = scalar_lea.sflag [#allocation8], 1
    %17 = vsyncpa %s16, 0
    %18 = vsyncpa [#allocation11], 0
    %19 = vsyncpa [#allocation6], 0
    %s20 = scalar_lea.sflag [#allocation6], 1
    %21 = vsyncpa %s20, 0
    %22 = vsyncpa [#allocation15], 0
    %s23 = scalar_lea.sflag [#allocation15], 1
    %24 = vsyncpa %s23, 0
    loop: start=0, step=1, limit=4
    $region2: #{tpu_custom_call.1} parent=1 // loop_pre_header
      _
    $region3: #{tpu_custom_call.1} parent=1 // loop_header
      %s26 = sphi 0, %s30
      %p27 = scmp.ge.s32.totalorder %s26, 4
      %s33 = sphi 0, %s45
      %s34 = sphi 0, %s41
      %s35 = sphi 0, %s33
      %s36 = sphi 0, %s34
      %s37 = sphi 0, %s35
      %s38 = sphi 0, %s36
      %s48 = sphi 0, %s50
      %s51 = sphi 0, %s48
      %s52 = sphi 0, %s51
      %s68 = sphi 0, %s52
      %s76 = sphi 0, %s78
      %s79 = sphi 0, %s76
      %s80 = sphi 0, %s79
      %s96 = sphi 0, %s80
      %s100 = sphi 0, %s100
      %s102 = sphi 0, %s100
      %s103 = sphi 0, %s102
      %s117 = sphi 0, %s103
      %s121 = sphi 0, %s121
      %s123 = sphi 0, %s121
      %s124 = sphi 0, %s123
      %s138 = sphi 0, %s124
      %s142 = sphi 0, %s142
      %s144 = sphi 0, %s142
      %s145 = sphi 0, %s144
      %s159 = sphi 0, %s145
      %s167 = sphi 0, %s169
      %s170 = sphi 0, %s167
      %s171 = sphi 0, %s170
      %s187 = sphi 0, %s171
      %s195 = sphi 0, %s197
      %s198 = sphi 0, %s195
      %s199 = sphi 0, %s198
      %s215 = sphi 0, %s199
    $region4: #{tpu_custom_call.1} parent=1 // loop_header_branch
      %29 = sbr.rel (%p27) target = $region8
    $region5: #{tpu_custom_call.1} parent=1 // loop_body
      %s31 = ssub.s32 %s26, 1
      %s32 = ssub.s32 %s26, 2
      %s39 = sadd.s32 1, %s34
      %p40 = scmp.ge.s32.totalorder %s39, 1
      %s41 = scalar_select %p40, 0, %s39
      %s42 = sadd.s32 1, %s33
      %s43 = scalar_select %p40, %s42, %s33
      %p44 = scmp.ge.s32.totalorder %s43, 2
      %s45 = scalar_select %p44, 0, %s43
      %s46 = ssub.s32 %s33, %s45
      %p47 = scmp.eq.s32.totalorder %s46, 0
      %s49 = sadd.s32 %s48, 1
      %s50 = scalar_select %p47, %s48, %s49
      %p53 = pneg %p47
      %p54 = scmp.eq.s32.totalorder %s26, 1
      %p55 = por %p53, %p54
      %p56 = scmp.ne.s32.totalorder %s48, %s51
      %p57 = scmp.eq.s32.totalorder %s26, 0
      %p58 = por %p56, %p57
      %p59 = scmp.ne.s32.totalorder %s48, %s51
      %p60 = scmp.eq.s32.totalorder %s31, 1
      %p61 = por %p59, %p60
      %p62 = scmp.ne.s32.totalorder %s51, %s52
      %p63 = scmp.eq.s32.totalorder %s31, 0
      %p64 = por %p62, %p63
      %p65 = scmp.ne.s32.totalorder %s51, %s52
      %p66 = scmp.eq.s32.totalorder %s32, 1
      %p67 = por %p65, %p66
      %p69 = scmp.ne.s32.totalorder %s52, %s68
      %p70 = scmp.eq.s32.totalorder %s32, 0
      %p71 = por %p69, %p70
      %s72 = ssub.s32 %s33, %s45
      %s73 = ssub.s32 %s34, %s41
      %s74 = sor.u32 %s72, %s73
      %p75 = scmp.eq.s32.totalorder %s74, 0
      %s77 = sadd.s32 %s76, 1
      %s78 = scalar_select %p75, %s76, %s77
      %p81 = pneg %p75
      %p82 = scmp.eq.s32.totalorder %s26, 1
      %p83 = por %p81, %p82
      %p84 = scmp.ne.s32.totalorder %s76, %s79
      %p85 = scmp.eq.s32.totalorder %s26, 0
      %p86 = por %p84, %p85
      %p87 = scmp.ne.s32.totalorder %s76, %s79
      %p88 = scmp.eq.s32.totalorder %s31, 1
      %p89 = por %p87, %p88
      %p90 = scmp.ne.s32.totalorder %s79, %s80
      %p91 = scmp.eq.s32.totalorder %s31, 0
      %p92 = por %p90, %p91
      %p93 = scmp.ne.s32.totalorder %s79, %s80
      %p94 = scmp.eq.s32.totalorder %s32, 1
      %p95 = por %p93, %p94
      %p97 = scmp.ne.s32.totalorder %s80, %s96
      %p98 = scmp.eq.s32.totalorder %s32, 0
      %p99 = por %p97, %p98
      %s101 = sadd.s32 %s100, 1
      %p104 = scmp.eq.s32.totalorder %s26, 1
      %p105 = scmp.ne.s32.totalorder %s100, %s102
      %p106 = scmp.eq.s32.totalorder %s26, 0
      %p107 = por %p105, %p106
      %p108 = scmp.ne.s32.totalorder %s100, %s102
      %p109 = scmp.eq.s32.totalorder %s31, 1
      %p110 = por %p108, %p109
      %p111 = scmp.ne.s32.totalorder %s102, %s103
      %p112 = scmp.eq.s32.totalorder %s31, 0
      %p113 = por %p111, %p112
      %p114 = scmp.ne.s32.totalorder %s102, %s103
      %p115 = scmp.eq.s32.totalorder %s32, 1
      %p116 = por %p114, %p115
      %p118 = scmp.ne.s32.totalorder %s103, %s117
      %p119 = scmp.eq.s32.totalorder %s32, 0
      %p120 = por %p118, %p119
      %s122 = sadd.s32 %s121, 1
      %p125 = scmp.eq.s32.totalorder %s26, 1
      %p126 = scmp.ne.s32.totalorder %s121, %s123
      %p127 = scmp.eq.s32.totalorder %s26, 0
      %p128 = por %p126, %p127
      %p129 = scmp.ne.s32.totalorder %s121, %s123
      %p130 = scmp.eq.s32.totalorder %s31, 1
      %p131 = por %p129, %p130
      %p132 = scmp.ne.s32.totalorder %s123, %s124
      %p133 = scmp.eq.s32.totalorder %s31, 0
      %p134 = por %p132, %p133
      %p135 = scmp.ne.s32.totalorder %s123, %s124
      %p136 = scmp.eq.s32.totalorder %s32, 1
      %p137 = por %p135, %p136
      %p139 = scmp.ne.s32.totalorder %s124, %s138
      %p140 = scmp.eq.s32.totalorder %s32, 0
      %p141 = por %p139, %p140
      %s143 = sadd.s32 %s142, 1
      %p146 = scmp.eq.s32.totalorder %s26, 1
      %p147 = scmp.ne.s32.totalorder %s142, %s144
      %p148 = scmp.eq.s32.totalorder %s26, 0
      %p149 = por %p147, %p148
      %p150 = scmp.ne.s32.totalorder %s142, %s144
      %p151 = scmp.eq.s32.totalorder %s31, 1
      %p152 = por %p150, %p151
      %p153 = scmp.ne.s32.totalorder %s144, %s145
      %p154 = scmp.eq.s32.totalorder %s31, 0
      %p155 = por %p153, %p154
      %p156 = scmp.ne.s32.totalorder %s144, %s145
      %p157 = scmp.eq.s32.totalorder %s32, 1
      %p158 = por %p156, %p157
      %p160 = scmp.ne.s32.totalorder %s145, %s159
      %p161 = scmp.eq.s32.totalorder %s32, 0
      %p162 = por %p160, %p161
      %s163 = ssub.s32 %s33, %s45
      %s164 = ssub.s32 %s34, %s41
      %s165 = sor.u32 %s163, %s164
      %p166 = scmp.eq.s32.totalorder %s165, 0
      %s168 = sadd.s32 %s167, 1
      %s169 = scalar_select %p166, %s167, %s168
      %p172 = pneg %p166
      %p173 = scmp.eq.s32.totalorder %s26, 1
      %p174 = por %p172, %p173
      %p175 = scmp.ne.s32.totalorder %s167, %s170
      %p176 = scmp.eq.s32.totalorder %s26, 0
      %p177 = por %p175, %p176
      %p178 = scmp.ne.s32.totalorder %s167, %s170
      %p179 = scmp.eq.s32.totalorder %s31, 1
      %p180 = por %p178, %p179
      %p181 = scmp.ne.s32.totalorder %s170, %s171
      %p182 = scmp.eq.s32.totalorder %s31, 0
      %p183 = por %p181, %p182
      %p184 = scmp.ne.s32.totalorder %s170, %s171
      %p185 = scmp.eq.s32.totalorder %s32, 1
      %p186 = por %p184, %p185
      %p188 = scmp.ne.s32.totalorder %s171, %s187
      %p189 = scmp.eq.s32.totalorder %s32, 0
      %p190 = por %p188, %p189
      %s191 = ssub.s32 %s33, %s45
      %s192 = ssub.s32 %s34, %s41
      %s193 = sor.u32 %s191, %s192
      %p194 = scmp.eq.s32.totalorder %s193, 0
      %s196 = sadd.s32 %s195, 1
      %s197 = scalar_select %p194, %s195, %s196
      %p200 = pneg %p194
      %p201 = scmp.eq.s32.totalorder %s26, 1
      %p202 = por %p200, %p201
      %p203 = scmp.ne.s32.totalorder %s195, %s198
      %p204 = scmp.eq.s32.totalorder %s26, 0
      %p205 = por %p203, %p204
      %p206 = scmp.ne.s32.totalorder %s195, %s198
      %p207 = scmp.eq.s32.totalorder %s31, 1
      %p208 = por %p206, %p207
      %p209 = scmp.ne.s32.totalorder %s198, %s199
      %p210 = scmp.eq.s32.totalorder %s31, 0
      %p211 = por %p209, %p210
      %p212 = scmp.ne.s32.totalorder %s198, %s199
      %p213 = scmp.eq.s32.totalorder %s32, 1
      %p214 = por %p212, %p213
      %p216 = scmp.ne.s32.totalorder %s199, %s215
      %p217 = scmp.eq.s32.totalorder %s32, 0
      %p218 = por %p216, %p217
      %p219 = scmp.le.s32.totalorder 1, %s26
      %p220 = scmp.lt.s32.totalorder %s26, 3
      %p221 = pnand %p219, %p220
      %p222 = pneg %p221
      // Predicated region
      $region9: #{tpu_custom_call.1} parent=5 // pred_check
        _
      $region10: #{tpu_custom_call.1} parent=5 // pred_check_branch
        %224 = sbr.rel (%p221) target = $region12
      $region11: #{tpu_custom_call.1} parent=5 // pred_region
        %s225 = ssub.s32 %s26, 1
        // Predicated region
        $region13: #{tpu_custom_call.1} parent=11 // pred_check
          %p226 = pneg %p113
        $region14: #{tpu_custom_call.1} parent=11 // pred_check_branch
          %228 = sbr.rel (%p226) target = $region16
        $region15: #{tpu_custom_call.1} parent=11 // pred_region
          %s230 = ssub.s32 512, 512
          %231 = vsyncadd [#allocation8], %s230
          %s232 = sshll.u32 [#allocation9], 4
          %s233 = int_to_ptr.vmem [resolvable:$true] %s232
          %238 = dma.hbm_to_vmem [thread:$0]  %s2, 512, %s233, [#allocation8], 128, 128, 8
        $region16: #{tpu_custom_call.1} parent=11 // pred_fallthru
          _
        // Predicated region
        $region17: #{tpu_custom_call.1} parent=11 // pred_check
          %p239 = pneg %p134
        $region18: #{tpu_custom_call.1} parent=11 // pred_check_branch
          %241 = sbr.rel (%p239) target = $region20
        $region19: #{tpu_custom_call.1} parent=11 // pred_region
          %s243 = ssub.s32 512, 512
          %244 = vsyncadd [#allocation11], %s243
          %s245 = sshll.u32 [#allocation10], 4
          %s246 = int_to_ptr.vmem [resolvable:$true] %s245
          %251 = dma.hbm_to_vmem [thread:$0]  %s3, 512, %s246, [#allocation11], 128, 128, 8
        $region20: #{tpu_custom_call.1} parent=11 // pred_fallthru
          _
        // Predicated region
        $region21: #{tpu_custom_call.1} parent=11 // pred_check
          %p252 = pneg %p155
        $region22: #{tpu_custom_call.1} parent=11 // pred_check_branch
          %254 = sbr.rel (%p252) target = $region24
        $region23: #{tpu_custom_call.1} parent=11 // pred_region
          %s256 = ssub.s32 512, 512
          %257 = vsyncadd [#allocation11], %s256
          %s258 = sshll.u32 [#allocation12], 4
          %s259 = int_to_ptr.vmem [resolvable:$true] %s258
          %264 = dma.hbm_to_vmem [thread:$0]  %s4, 512, %s259, [#allocation11], 128, 128, 8
        $region24: #{tpu_custom_call.1} parent=11 // pred_fallthru
          _
      $region12: #{tpu_custom_call.1} parent=5 // pred_fallthru
        _
      %p265 = scmp.lt.s32.totalorder %s26, 2
      // Predicated region
      $region25: #{tpu_custom_call.1} parent=5 // pred_check
        %p266 = pneg %p265
      $region26: #{tpu_custom_call.1} parent=5 // pred_check_branch
        %268 = sbr.rel (%p266) target = $region28
      $region27: #{tpu_custom_call.1} parent=5 // pred_region
        // Predicated region
        $region29: #{tpu_custom_call.1} parent=27 // pred_check
          %p269 = pneg %p58
        $region30: #{tpu_custom_call.1} parent=27 // pred_check_branch
          %271 = sbr.rel (%p269) target = $region32
        $region31: #{tpu_custom_call.1} parent=27 // pred_region
          %s272 = sand.u32 %s48, 1
          %s273 = scalar_lea.sflag [#allocation5], %s272
          %s274 = sand.u32 %s48, 1
          %s275 = smul.addr %s274, 16
          %s276 = scalar_lea.vmem [#allocation4], %s275
          %s278 = ssub.s32 256, 256
          %279 = vsyncadd %s273, %s278
          %s280 = smul.addr %s33, 2
          %s281 = smul.addr %s280, 128
          %s282 = scalar_lea.hbm %s0, %s281
          %s283 = sshll.u32 %s276, 4
          %s284 = int_to_ptr.vmem [resolvable:$true] %s283
          %289 = dma.hbm_to_vmem [thread:$0]  %s282, 256, %s284, %s273, 128, 128, 8
        $region32: #{tpu_custom_call.1} parent=27 // pred_fallthru
          _
        // Predicated region
        $region33: #{tpu_custom_call.1} parent=27 // pred_check
          %p290 = pneg %p86
        $region34: #{tpu_custom_call.1} parent=27 // pred_check_branch
          %292 = sbr.rel (%p290) target = $region36
        $region35: #{tpu_custom_call.1} parent=27 // pred_region
          %s293 = sand.u32 %s26, 1
          %s294 = scalar_lea.sflag [#allocation8], %s293
          %s295 = sand.u32 %s76, 1
          %s296 = smul.addr %s295, 8
          %s297 = scalar_lea.vmem [#allocation7], %s296
          %s299 = ssub.s32 128, 128
          %300 = vsyncadd %s294, %s299
          %s301 = sadd.s32 %s34, %s33
          %s302 = smul.addr %s301, 128
          %s303 = scalar_lea.hbm %s1, %s302
          %s305 = sshll.u32 %s297, 4
          %s306 = int_to_ptr.vmem [resolvable:$true] %s305
          %308 = dma.hbm_to_vmem [thread:$0]  %s303, 128, %s306, %s294
        $region36: #{tpu_custom_call.1} parent=27 // pred_fallthru
          _
      $region28: #{tpu_custom_call.1} parent=5 // pred_fallthru
        _
      %p309 = scmp.le.s32.totalorder 1, %s26
      %p310 = scmp.lt.s32.totalorder %s26, 3
      %p311 = pnand %p309, %p310
      %p312 = pneg %p311
      // Predicated region
      $region37: #{tpu_custom_call.1} parent=5 // pred_check
        _
      $region38: #{tpu_custom_call.1} parent=5 // pred_check_branch
        %314 = sbr.rel (%p311) target = $region40
      $region39: #{tpu_custom_call.1} parent=5 // pred_region
        %s315 = ssub.s32 %s26, 1
        %s316 = sand.u32 %s51, 1
        %s317 = scalar_lea.sflag [#allocation5], %s316
        %s318 = sand.u32 %s51, 1
        %s319 = smul.addr %s318, 16
        %s320 = scalar_lea.vmem [#allocation4], %s319
        // Predicated region
        $region41: #{tpu_custom_call.1} parent=39 // pred_check
          %p321 = pneg %p64
        $region42: #{tpu_custom_call.1} parent=39 // pred_check_branch
          %323 = sbr.rel (%p321) target = $region44
        $region43: #{tpu_custom_call.1} parent=39 // pred_region
          %324 = dma.done %s317, 256
        $region44: #{tpu_custom_call.1} parent=39 // pred_fallthru
          _
        %s325 = sand.u32 %s31, 1
        %s326 = scalar_lea.sflag [#allocation8], %s325
        %s327 = sand.u32 %s79, 1
        %s328 = smul.addr %s327, 8
        %s329 = scalar_lea.vmem [#allocation7], %s328
        // Predicated region
        $region45: #{tpu_custom_call.1} parent=39 // pred_check
          %p330 = pneg %p92
        $region46: #{tpu_custom_call.1} parent=39 // pred_check_branch
          %332 = sbr.rel (%p330) target = $region48
        $region47: #{tpu_custom_call.1} parent=39 // pred_region
          %333 = dma.done %s326, 128
        $region48: #{tpu_custom_call.1} parent=39 // pred_fallthru
          _
        // Predicated region
        $region49: #{tpu_custom_call.1} parent=39 // pred_check
          %p334 = pneg %p113
        $region50: #{tpu_custom_call.1} parent=39 // pred_check_branch
          %336 = sbr.rel (%p334) target = $region52
        $region51: #{tpu_custom_call.1} parent=39 // pred_region
          %337 = dma.done [#allocation8], 512
        $region52: #{tpu_custom_call.1} parent=39 // pred_fallthru
          _
        // Predicated region
        $region53: #{tpu_custom_call.1} parent=39 // pred_check
          %p338 = pneg %p134
        $region54: #{tpu_custom_call.1} parent=39 // pred_check_branch
          %340 = sbr.rel (%p338) target = $region56
        $region55: #{tpu_custom_call.1} parent=39 // pred_region
          %341 = dma.done [#allocation11], 512
        $region56: #{tpu_custom_call.1} parent=39 // pred_fallthru
          _
        // Predicated region
        $region57: #{tpu_custom_call.1} parent=39 // pred_check
          %p342 = pneg %p155
        $region58: #{tpu_custom_call.1} parent=39 // pred_check_branch
          %344 = sbr.rel (%p342) target = $region60
        $region59: #{tpu_custom_call.1} parent=39 // pred_region
          %345 = dma.done [#allocation11], 512
        $region60: #{tpu_custom_call.1} parent=39 // pred_fallthru
          _
        %s346 = sand.u32 %s51, 1
        %s347 = scalar_lea.sflag [#allocation5], %s346
        %s348 = sand.u32 %s51, 1
        %s349 = smul.addr %s348, 16
        %s350 = scalar_lea.vmem [#allocation4], %s349
        %p351 = pneg %p64
        %p352 = pneg %p61
        %s353 = sand.u32 %s31, 1
        %s354 = scalar_lea.sflag [#allocation8], %s353
        %s355 = sand.u32 %s79, 1
        %s356 = smul.addr %s355, 8
        %s357 = scalar_lea.vmem [#allocation7], %s356
        %p358 = pneg %p92
        %p359 = pneg %p89
        %p360 = pneg %p113
        %p361 = pneg %p110
        %p362 = pneg %p134
        %p363 = pneg %p131
        %p364 = pneg %p155
        %p365 = pneg %p152
        %p366 = pneg %p183
        %p367 = pneg %p180
        %s368 = sand.u32 %s170, 1
        %s369 = scalar_lea.sflag [#allocation6], %s368
        %s370 = sand.u32 %s170, 1
        %s371 = smul.addr %s370, 8
        %s372 = scalar_lea.vmem [#allocation13], %s371
        %p373 = pneg %p211
        %p374 = pneg %p208
        %s375 = sand.u32 %s198, 1
        %s376 = scalar_lea.sflag [#allocation15], %s375
        %s377 = sand.u32 %s198, 1
        %s378 = smul.addr %s377, 32
        %s379 = scalar_lea.vmem [#allocation14], %s378
        %p380 = scmp.eq.s32.totalorder %s36, 0
        // Predicated region
        $region61: #{tpu_custom_call.1} parent=39 // pred_check
          %p381 = pneg %p380
        $region62: #{tpu_custom_call.1} parent=39 // pred_check_branch
          %383 = sbr.rel (%p381) target = $region64
        $region63: #{tpu_custom_call.1} parent=39 // pred_region
          %v384 = vld [vmem:[%s320] sm:$0xff]
          %v385 = vld [vmem:[%s320 + $0x8] sm:$0xff]
          %v386 = vld [vmem:[#allocation10] sm:$0xff]
          %v387 = vld [vmem:[#allocation10 + $0x8] sm:$0xff]
          %v388 = vld [vmem:[#allocation10 + $0x10] sm:$0xff]
          %v389 = vld [vmem:[#allocation10 + $0x18] sm:$0xff]
          %vm390 = vcmask 261120
          %v392 = vsel %vm390, %v384, 0
          %v395 = vsel %vm390, %v385, 0
          %397 = vmatprep.subr.mxu0 0.0
          %398 = vmatpush1.msra.mxu0 %v386
          %399 = vmatprep.subr.mxu0 0.0
          %400 = vmatpush1.msra.mxu0 %v387
          %401 = vmatprep.subr.mxu0 0.0
          %402 = vmatpush1.msra.mxu0 %v388
          %403 = vmatprep.subr.mxu0 0.0
          %404 = vmatpush1.msra.mxu0 %v389
          %405 = vmatprep.subr.mxu0 0.0
          %406 = vmatpush1.msra.mxu0 0.0
          %407 = vmatprep.subr.mxu0 0.0
          %408 = vmatpush1.msra.mxu0 0.0
          %409 = vmatprep.subr.mxu0 0.0
          %410 = vmatpush1.msra.mxu0 0.0
          %411 = vmatprep.subr.mxu0 0.0
          %412 = vmatpush1.msra.mxu0 0.0
          %413 = vmatprep.subr.mxu0 0.0
          %414 = vmatpush1.msra.mxu0 0.0
          %415 = vmatprep.subr.mxu0 0.0
          %416 = vmatpush1.msra.mxu0 0.0
          %417 = vmatprep.subr.mxu0 0.0
          %418 = vmatpush1.msra.mxu0 0.0
          %419 = vmatprep.subr.mxu0 0.0
          %420 = vmatpush1.msra.mxu0 0.0
          %421 = vmatprep.subr.mxu0 0.0
          %422 = vmatpush1.msra.mxu0 0.0
          %423 = vmatprep.subr.mxu0 0.0
          %424 = vmatpush1.msra.mxu0 0.0
          %425 = vmatprep.subr.mxu0 0.0
          %426 = vmatpush1.msra.mxu0 0.0
          %427 = vmatprep.subr.mxu0 0.0
          %428 = vmatpush1.msra.mxu0 0.0
          %429 = vmatprep.subr.mxu0 0.0
          %430 = vmatpush1.msra.mxu0 0.0
          %431 = vmatprep.subr.mxu0 0.0
          %432 = vmatpush1.msra.mxu0 0.0
          %433 = vmatprep.subr.mxu0 0.0
          %434 = vmatpush1.msra.mxu0 0.0
          %435 = vmatprep.subr.mxu0 0.0
          %436 = vmatpush1.msra.mxu0 0.0
          %437 = vmatprep.subr.mxu0 0.0
          %438 = vmatpush1.msra.mxu0 0.0
          %439 = vmatprep.subr.mxu0 0.0
          %440 = vmatpush1.msra.mxu0 0.0
          %441 = vmatprep.subr.mxu0 0.0
          %442 = vmatpush1.msra.mxu0 0.0
          %443 = vmatprep.subr.mxu0 0.0
          %444 = vmatpush1.msra.mxu0 0.0
          %445 = vmatprep.subr.mxu0 0.0
          %446 = vmatpush1.msra.mxu0 0.0
          %447 = vmatprep.subr.mxu0 0.0
          %448 = vmatpush1.msra.mxu0 0.0
          %449 = vmatprep.subr.mxu0 0.0
          %450 = vmatpush1.msra.mxu0 0.0
          %451 = vmatprep.subr.mxu0 0.0
          %452 = vmatpush1.msra.mxu0 0.0
          %453 = vmatprep.subr.mxu0 0.0
          %454 = vmatpush1.msra.mxu0 0.0
          %455 = vmatprep.subr.mxu0 0.0
          %456 = vmatpush1.msra.mxu0 0.0
          %457 = vmatprep.subr.mxu0 0.0
          %458 = vmatpush1.msra.mxu0 0.0
          %459 = vmatprep.subr.mxu0 0.0
          %460 = vmatpush1.msra.mxu0 0.0
          %461 = vmatprep.mubr.f32.mxu0 0.0
          %462 = vmatmul.mubr.f32.gmra.mrb[0].mxu0 %v392
          %v463 = vpop.f32.mrb[0].mxu0
          %v464 = vadd.f32 0.0, %v463
          %v465 = vpop.f32.mrb[0].mxu0
          %466 = vmatprep.mubr.f32.mxu0 0.0
          %467 = vmatmul.mubr.f32.gmra.mrb[0].mxu0 %v395
          %v468 = vpop.f32.mrb[0].mxu0
          %v469 = vadd.f32 0.0, %v468
          %v470 = vpop.f32.mrb[0].mxu0
          %471 = vdwg.mxu0
          %472 = vst.msk [vmem:[#allocation2] sm:$0xff] %vm390, %v464
          %473 = vst.msk [vmem:[#allocation2 + $0x8] sm:$0xff] %vm390, %v469
          %v474 = vld [vmem:[#allocation12] sm:$0xff]
          %477 = vrot.lane.b32.xlu0 %v464, 96
          %v478 = vpop.permute.xlu0 %477
          %479 = vrot.lane.b32.xlu0 %v469, 96
          %v480 = vpop.permute.xlu0 %479
          %vm481 = vcmask 64512
          %v482 = vsel %vm481, %v478, 0
          %v484 = vsel %vm481, %v480, 0
          %486 = vmatprep.subr.mxu0 0.0
          %487 = vmatpush1.msra.mxu0 %v474
          %488 = vmatprep.subr.mxu0 0.0
          %489 = vmatpush1.msra.mxu0 0.0
          %490 = vmatprep.subr.mxu0 0.0
          %491 = vmatpush1.msra.mxu0 0.0
          %492 = vmatprep.subr.mxu0 0.0
          %493 = vmatpush1.msra.mxu0 0.0
          %494 = vmatprep.subr.mxu0 0.0
          %495 = vmatpush1.msra.mxu0 0.0
          %496 = vmatprep.subr.mxu0 0.0
          %497 = vmatpush1.msra.mxu0 0.0
          %498 = vmatprep.subr.mxu0 0.0
          %499 = vmatpush1.msra.mxu0 0.0
          %500 = vmatprep.subr.mxu0 0.0
          %501 = vmatpush1.msra.mxu0 0.0
          %502 = vmatprep.subr.mxu0 0.0
          %503 = vmatpush1.msra.mxu0 0.0
          %504 = vmatprep.subr.mxu0 0.0
          %505 = vmatpush1.msra.mxu0 0.0
          %506 = vmatprep.subr.mxu0 0.0
          %507 = vmatpush1.msra.mxu0 0.0
          %508 = vmatprep.subr.mxu0 0.0
          %509 = vmatpush1.msra.mxu0 0.0
          %510 = vmatprep.subr.mxu0 0.0
          %511 = vmatpush1.msra.mxu0 0.0
          %512 = vmatprep.subr.mxu0 0.0
          %513 = vmatpush1.msra.mxu0 0.0
          %514 = vmatprep.subr.mxu0 0.0
          %515 = vmatpush1.msra.mxu0 0.0
          %516 = vmatprep.subr.mxu0 0.0
          %517 = vmatpush1.msra.mxu0 0.0
          %518 = vmatprep.subr.mxu0 0.0
          %519 = vmatpush1.msra.mxu0 0.0
          %520 = vmatprep.subr.mxu0 0.0
          %521 = vmatpush1.msra.mxu0 0.0
          %522 = vmatprep.subr.mxu0 0.0
          %523 = vmatpush1.msra.mxu0 0.0
          %524 = vmatprep.subr.mxu0 0.0
          %525 = vmatpush1.msra.mxu0 0.0
          %526 = vmatprep.subr.mxu0 0.0
          %527 = vmatpush1.msra.mxu0 0.0
          %528 = vmatprep.subr.mxu0 0.0
          %529 = vmatpush1.msra.mxu0 0.0
          %530 = vmatprep.subr.mxu0 0.0
          %531 = vmatpush1.msra.mxu0 0.0
          %532 = vmatprep.subr.mxu0 0.0
          %533 = vmatpush1.msra.mxu0 0.0
          %534 = vmatprep.subr.mxu0 0.0
          %535 = vmatpush1.msra.mxu0 0.0
          %536 = vmatprep.subr.mxu0 0.0
          %537 = vmatpush1.msra.mxu0 0.0
          %538 = vmatprep.subr.mxu0 0.0
          %539 = vmatpush1.msra.mxu0 0.0
          %540 = vmatprep.subr.mxu0 0.0
          %541 = vmatpush1.msra.mxu0 0.0
          %542 = vmatprep.subr.mxu0 0.0
          %543 = vmatpush1.msra.mxu0 0.0
          %544 = vmatprep.subr.mxu0 0.0
          %545 = vmatpush1.msra.mxu0 0.0
          %546 = vmatprep.subr.mxu0 0.0
          %547 = vmatpush1.msra.mxu0 0.0
          %548 = vmatprep.subr.mxu0 0.0
          %549 = vmatpush1.msra.mxu0 0.0
          %550 = vmatprep.mubr.f32.mxu0 0.0
          %551 = vmatmul.mubr.f32.gmra.mrb[0].mxu0 %v482
          %v552 = vpop.f32.mrb[0].mxu0
          %v553 = vadd.f32 0.0, %v552
          %v554 = vpop.f32.mrb[0].mxu0
          %555 = vmatprep.mubr.f32.mxu0 0.0
          %556 = vmatmul.mubr.f32.gmra.mrb[0].mxu0 %v484
          %v557 = vpop.f32.mrb[0].mxu0
          %v558 = vadd.f32 0.0, %v557
          %v559 = vpop.f32.mrb[0].mxu0
          %560 = vdwg.mxu0
          %vm561 = vcmask 7168
          %562 = vst.msk [vmem:[#allocation3] sm:$0xff] %vm561, %v553
          %563 = vst.msk [vmem:[#allocation3 + $0x8] sm:$0xff] %vm561, %v558
          %v564 = vld [vmem:[#allocation12 + $0x8] sm:$0xff]
          %565 = vrot.lane.b32.xlu0 %v464, 88
          %v566 = vpop.permute.xlu0 %565
          %567 = vrot.lane.b32.xlu0 %v469, 88
          %v568 = vpop.permute.xlu0 %567
          %v569 = vsel %vm481, %v566, 0
          %v571 = vsel %vm481, %v568, 0
          %573 = vmatprep.subr.mxu0 0.0
          %574 = vmatpush1.msra.mxu0 %v564
          %575 = vmatprep.subr.mxu0 0.0
          %576 = vmatpush1.msra.mxu0 0.0
          %577 = vmatprep.subr.mxu0 0.0
          %578 = vmatpush1.msra.mxu0 0.0
          %579 = vmatprep.subr.mxu0 0.0
          %580 = vmatpush1.msra.mxu0 0.0
          %581 = vmatprep.subr.mxu0 0.0
          %582 = vmatpush1.msra.mxu0 0.0
          %583 = vmatprep.subr.mxu0 0.0
          %584 = vmatpush1.msra.mxu0 0.0
          %585 = vmatprep.subr.mxu0 0.0
          %586 = vmatpush1.msra.mxu0 0.0
          %587 = vmatprep.subr.mxu0 0.0
          %588 = vmatpush1.msra.mxu0 0.0
          %589 = vmatprep.subr.mxu0 0.0
          %590 = vmatpush1.msra.mxu0 0.0
          %591 = vmatprep.subr.mxu0 0.0
          %592 = vmatpush1.msra.mxu0 0.0
          %593 = vmatprep.subr.mxu0 0.0
          %594 = vmatpush1.msra.mxu0 0.0
          %595 = vmatprep.subr.mxu0 0.0
          %596 = vmatpush1.msra.mxu0 0.0
          %597 = vmatprep.subr.mxu0 0.0
          %598 = vmatpush1.msra.mxu0 0.0
          %599 = vmatprep.subr.mxu0 0.0
          %600 = vmatpush1.msra.mxu0 0.0
          %601 = vmatprep.subr.mxu0 0.0
          %602 = vmatpush1.msra.mxu0 0.0
          %603 = vmatprep.subr.mxu0 0.0
          %604 = vmatpush1.msra.mxu0 0.0
          %605 = vmatprep.subr.mxu0 0.0
          %606 = vmatpush1.msra.mxu0 0.0
          %607 = vmatprep.subr.mxu0 0.0
          %608 = vmatpush1.msra.mxu0 0.0
          %609 = vmatprep.subr.mxu0 0.0
          %610 = vmatpush1.msra.mxu0 0.0
          %611 = vmatprep.subr.mxu0 0.0
          %612 = vmatpush1.msra.mxu0 0.0
          %613 = vmatprep.subr.mxu0 0.0
          %614 = vmatpush1.msra.mxu0 0.0
          %615 = vmatprep.subr.mxu0 0.0
          %616 = vmatpush1.msra.mxu0 0.0
          %617 = vmatprep.subr.mxu0 0.0
          %618 = vmatpush1.msra.mxu0 0.0
          %619 = vmatprep.subr.mxu0 0.0
          %620 = vmatpush1.msra.mxu0 0.0
          %621 = vmatprep.subr.mxu0 0.0
          %622 = vmatpush1.msra.mxu0 0.0
          %623 = vmatprep.subr.mxu0 0.0
          %624 = vmatpush1.msra.mxu0 0.0
          %625 = vmatprep.subr.mxu0 0.0
          %626 = vmatpush1.msra.mxu0 0.0
          %627 = vmatprep.subr.mxu0 0.0
          %628 = vmatpush1.msra.mxu0 0.0
          %629 = vmatprep.subr.mxu0 0.0
          %630 = vmatpush1.msra.mxu0 0.0
          %631 = vmatprep.subr.mxu0 0.0
          %632 = vmatpush1.msra.mxu0 0.0
          %633 = vmatprep.subr.mxu0 0.0
          %634 = vmatpush1.msra.mxu0 0.0
          %635 = vmatprep.subr.mxu0 0.0
          %636 = vmatpush1.msra.mxu0 0.0
          %637 = vmatprep.mubr.f32.mxu0 0.0
          %638 = vmatmul.mubr.f32.gmra.mrb[0].mxu0 %v569
          %v639 = vpop.f32.mrb[0].mxu0
          %v640 = vadd.f32 0.0, %v639
          %v641 = vpop.f32.mrb[0].mxu0
          %642 = vmatprep.mubr.f32.mxu0 0.0
          %643 = vmatmul.mubr.f32.gmra.mrb[0].mxu0 %v571
          %v644 = vpop.f32.mrb[0].mxu0
          %v645 = vadd.f32 0.0, %v644
          %v646 = vpop.f32.mrb[0].mxu0
          %647 = vdwg.mxu0
          %650 = vrot.lane.b32.xlu0 %v640, 1
          %v651 = vpop.permute.xlu0 %650
          %652 = vrot.lane.b32.xlu0 %v645, 1
          %v653 = vpop.permute.xlu0 %652
          %vm656 = vcmask 15368
          %657 = vst.msk [vmem:[#allocation3] sm:$0xff] %vm656, %v651
          %658 = vst.msk [vmem:[#allocation3 + $0x8] sm:$0xff] %vm656, %v653
          %v659 = vld [vmem:[#allocation12 + $0x10] sm:$0xff]
          %660 = vrot.lane.b32.xlu0 %v464, 80
          %v661 = vpop.permute.xlu0 %660
          %662 = vrot.lane.b32.xlu0 %v469, 80
          %v663 = vpop.permute.xlu0 %662
          %v664 = vsel %vm481, %v661, 0
          %v666 = vsel %vm481, %v663, 0
          %668 = vmatprep.subr.mxu0 0.0
          %669 = vmatpush1.msra.mxu0 %v659
          %670 = vmatprep.subr.mxu0 0.0
          %671 = vmatpush1.msra.mxu0 0.0
          %672 = vmatprep.subr.mxu0 0.0
          %673 = vmatpush1.msra.mxu0 0.0
          %674 = vmatprep.subr.mxu0 0.0
          %675 = vmatpush1.msra.mxu0 0.0
          %676 = vmatprep.subr.mxu0 0.0
          %677 = vmatpush1.msra.mxu0 0.0
          %678 = vmatprep.subr.mxu0 0.0
          %679 = vmatpush1.msra.mxu0 0.0
          %680 = vmatprep.subr.mxu0 0.0
          %681 = vmatpush1.msra.mxu0 0.0
          %682 = vmatprep.subr.mxu0 0.0
          %683 = vmatpush1.msra.mxu0 0.0
          %684 = vmatprep.subr.mxu0 0.0
          %685 = vmatpush1.msra.mxu0 0.0
          %686 = vmatprep.subr.mxu0 0.0
          %687 = vmatpush1.msra.mxu0 0.0
          %688 = vmatprep.subr.mxu0 0.0
          %689 = vmatpush1.msra.mxu0 0.0
          %690 = vmatprep.subr.mxu0 0.0
          %691 = vmatpush1.msra.mxu0 0.0
          %692 = vmatprep.subr.mxu0 0.0
          %693 = vmatpush1.msra.mxu0 0.0
          %694 = vmatprep.subr.mxu0 0.0
          %695 = vmatpush1.msra.mxu0 0.0
          %696 = vmatprep.subr.mxu0 0.0
          %697 = vmatpush1.msra.mxu0 0.0
          %698 = vmatprep.subr.mxu0 0.0
          %699 = vmatpush1.msra.mxu0 0.0
          %700 = vmatprep.subr.mxu0 0.0
          %701 = vmatpush1.msra.mxu0 0.0
          %702 = vmatprep.subr.mxu0 0.0
          %703 = vmatpush1.msra.mxu0 0.0
          %704 = vmatprep.subr.mxu0 0.0
          %705 = vmatpush1.msra.mxu0 0.0
          %706 = vmatprep.subr.mxu0 0.0
          %707 = vmatpush1.msra.mxu0 0.0
          %708 = vmatprep.subr.mxu0 0.0
          %709 = vmatpush1.msra.mxu0 0.0
          %710 = vmatprep.subr.mxu0 0.0
          %711 = vmatpush1.msra.mxu0 0.0
          %712 = vmatprep.subr.mxu0 0.0
          %713 = vmatpush1.msra.mxu0 0.0
          %714 = vmatprep.subr.mxu0 0.0
          %715 = vmatpush1.msra.mxu0 0.0
          %716 = vmatprep.subr.mxu0 0.0
          %717 = vmatpush1.msra.mxu0 0.0
          %718 = vmatprep.subr.mxu0 0.0
          %719 = vmatpush1.msra.mxu0 0.0
          %720 = vmatprep.subr.mxu0 0.0
          %721 = vmatpush1.msra.mxu0 0.0
          %722 = vmatprep.subr.mxu0 0.0
          %723 = vmatpush1.msra.mxu0 0.0
          %724 = vmatprep.subr.mxu0 0.0
          %725 = vmatpush1.msra.mxu0 0.0
          %726 = vmatprep.subr.mxu0 0.0
          %727 = vmatpush1.msra.mxu0 0.0
          %728 = vmatprep.subr.mxu0 0.0
          %729 = vmatpush1.msra.mxu0 0.0
          %730 = vmatprep.subr.mxu0 0.0
          %731 = vmatpush1.msra.mxu0 0.0
          %732 = vmatprep.mubr.f32.mxu0 0.0
          %733 = vmatmul.mubr.f32.gmra.mrb[0].mxu0 %v664
          %v734 = vpop.f32.mrb[0].mxu0
          %v735 = vadd.f32 0.0, %v734
          %v736 = vpop.f32.mrb[0].mxu0
          %737 = vmatprep.mubr.f32.mxu0 0.0
          %738 = vmatmul.mubr.f32.gmra.mrb[0].mxu0 %v666
          %v739 = vpop.f32.mrb[0].mxu0
          %v740 = vadd.f32 0.0, %v739
          %v741 = vpop.f32.mrb[0].mxu0
          %742 = vdwg.mxu0
          %745 = vrot.lane.b32.xlu0 %v735, 2
          %v746 = vpop.permute.xlu0 %745
          %747 = vrot.lane.b32.xlu0 %v740, 2
          %v748 = vpop.permute.xlu0 %747
          %vm751 = vcmask 23568
          %752 = vst.msk [vmem:[#allocation3] sm:$0xff] %vm751, %v746
          %753 = vst.msk [vmem:[#allocation3 + $0x8] sm:$0xff] %vm751, %v748
          %v754 = vld [vmem:[#allocation12 + $0x18] sm:$0xff]
          %755 = vrot.lane.b32.xlu0 %v464, 72
          %v756 = vpop.permute.xlu0 %755
          %757 = vrot.lane.b32.xlu0 %v469, 72
          %v758 = vpop.permute.xlu0 %757
          %v759 = vsel %vm481, %v756, 0
          %v761 = vsel %vm481, %v758, 0
          %763 = vmatprep.subr.mxu0 0.0
          %764 = vmatpush1.msra.mxu0 %v754
          %765 = vmatprep.subr.mxu0 0.0
          %766 = vmatpush1.msra.mxu0 0.0
          %767 = vmatprep.subr.mxu0 0.0
          %768 = vmatpush1.msra.mxu0 0.0
          %769 = vmatprep.subr.mxu0 0.0
          %770 = vmatpush1.msra.mxu0 0.0
          %771 = vmatprep.subr.mxu0 0.0
          %772 = vmatpush1.msra.mxu0 0.0
          %773 = vmatprep.subr.mxu0 0.0
          %774 = vmatpush1.msra.mxu0 0.0
          %775 = vmatprep.subr.mxu0 0.0
          %776 = vmatpush1.msra.mxu0 0.0
          %777 = vmatprep.subr.mxu0 0.0
          %778 = vmatpush1.msra.mxu0 0.0
          %779 = vmatprep.subr.mxu0 0.0
          %780 = vmatpush1.msra.mxu0 0.0
          %781 = vmatprep.subr.mxu0 0.0
          %782 = vmatpush1.msra.mxu0 0.0
          %783 = vmatprep.subr.mxu0 0.0
          %784 = vmatpush1.msra.mxu0 0.0
          %785 = vmatprep.subr.mxu0 0.0
          %786 = vmatpush1.msra.mxu0 0.0
          %787 = vmatprep.subr.mxu0 0.0
          %788 = vmatpush1.msra.mxu0 0.0
          %789 = vmatprep.subr.mxu0 0.0
          %790 = vmatpush1.msra.mxu0 0.0
          %791 = vmatprep.subr.mxu0 0.0
          %792 = vmatpush1.msra.mxu0 0.0
          %793 = vmatprep.subr.mxu0 0.0
          %794 = vmatpush1.msra.mxu0 0.0
          %795 = vmatprep.subr.mxu0 0.0
          %796 = vmatpush1.msra.mxu0 0.0
          %797 = vmatprep.subr.mxu0 0.0
          %798 = vmatpush1.msra.mxu0 0.0
          %799 = vmatprep.subr.mxu0 0.0
          %800 = vmatpush1.msra.mxu0 0.0
          %801 = vmatprep.subr.mxu0 0.0
          %802 = vmatpush1.msra.mxu0 0.0
          %803 = vmatprep.subr.mxu0 0.0
          %804 = vmatpush1.msra.mxu0 0.0
          %805 = vmatprep.subr.mxu0 0.0
          %806 = vmatpush1.msra.mxu0 0.0
          %807 = vmatprep.subr.mxu0 0.0
          %808 = vmatpush1.msra.mxu0 0.0
          %809 = vmatprep.subr.mxu0 0.0
          %810 = vmatpush1.msra.mxu0 0.0
          %811 = vmatprep.subr.mxu0 0.0
          %812 = vmatpush1.msra.mxu0 0.0
          %813 = vmatprep.subr.mxu0 0.0
          %814 = vmatpush1.msra.mxu0 0.0
          %815 = vmatprep.subr.mxu0 0.0
          %816 = vmatpush1.msra.mxu0 0.0
          %817 = vmatprep.subr.mxu0 0.0
          %818 = vmatpush1.msra.mxu0 0.0
          %819 = vmatprep.subr.mxu0 0.0
          %820 = vmatpush1.msra.mxu0 0.0
          %821 = vmatprep.subr.mxu0 0.0
          %822 = vmatpush1.msra.mxu0 0.0
          %823 = vmatprep.subr.mxu0 0.0
          %824 = vmatpush1.msra.mxu0 0.0
          %825 = vmatprep.subr.mxu0 0.0
          %826 = vmatpush1.msra.mxu0 0.0
          %827 = vmatprep.mubr.f32.mxu0 0.0
          %828 = vmatmul.mubr.f32.gmra.mrb[0].mxu0 %v759
          %v829 = vpop.f32.mrb[0].mxu0
          %v830 = vadd.f32 0.0, %v829
          %v831 = vpop.f32.mrb[0].mxu0
          %832 = vmatprep.mubr.f32.mxu0 0.0
          %833 = vmatmul.mubr.f32.gmra.mrb[0].mxu0 %v761
          %v834 = vpop.f32.mrb[0].mxu0
          %v835 = vadd.f32 0.0, %v834
          %v836 = vpop.f32.mrb[0].mxu0
          %837 = vdwg.mxu0
          %840 = vrot.lane.b32.xlu0 %v830, 3
          %v841 = vpop.permute.xlu0 %840
          %842 = vrot.lane.b32.xlu0 %v835, 3
          %v843 = vpop.permute.xlu0 %842
          %vm846 = vcmask 31768
          %847 = vst.msk [vmem:[#allocation3] sm:$0xff] %vm846, %v841
          %848 = vst.msk [vmem:[#allocation3 + $0x8] sm:$0xff] %vm846, %v843
        $region64: #{tpu_custom_call.1} parent=39 // pred_fallthru
          _
        %v849 = vld [vmem:[%s329] sm:$0xff]
        %v850 = vld [vmem:[#allocation9] sm:$0xff]
        %v851 = vld [vmem:[#allocation9 + $0x8] sm:$0xff]
        %v852 = vld [vmem:[#allocation9 + $0x10] sm:$0xff]
        %v853 = vld [vmem:[#allocation9 + $0x18] sm:$0xff]
        %vm854 = vcmask 261120
        %v856 = vsel %vm854, %v849, 0
        %858 = vmatprep.subr.mxu0 0.0
        %859 = vmatpush1.msra.mxu0 %v850
        %860 = vmatprep.subr.mxu0 0.0
        %861 = vmatpush1.msra.mxu0 %v851
        %862 = vmatprep.subr.mxu0 0.0
        %863 = vmatpush1.msra.mxu0 %v852
        %864 = vmatprep.subr.mxu0 0.0
        %865 = vmatpush1.msra.mxu0 %v853
        %866 = vmatprep.subr.mxu0 0.0
        %867 = vmatpush1.msra.mxu0 0.0
        %868 = vmatprep.subr.mxu0 0.0
        %869 = vmatpush1.msra.mxu0 0.0
        %870 = vmatprep.subr.mxu0 0.0
        %871 = vmatpush1.msra.mxu0 0.0
        %872 = vmatprep.subr.mxu0 0.0
        %873 = vmatpush1.msra.mxu0 0.0
        %874 = vmatprep.subr.mxu0 0.0
        %875 = vmatpush1.msra.mxu0 0.0
        %876 = vmatprep.subr.mxu0 0.0
        %877 = vmatpush1.msra.mxu0 0.0
        %878 = vmatprep.subr.mxu0 0.0
        %879 = vmatpush1.msra.mxu0 0.0
        %880 = vmatprep.subr.mxu0 0.0
        %881 = vmatpush1.msra.mxu0 0.0
        %882 = vmatprep.subr.mxu0 0.0
        %883 = vmatpush1.msra.mxu0 0.0
        %884 = vmatprep.subr.mxu0 0.0
        %885 = vmatpush1.msra.mxu0 0.0
        %886 = vmatprep.subr.mxu0 0.0
        %887 = vmatpush1.msra.mxu0 0.0
        %888 = vmatprep.subr.mxu0 0.0
        %889 = vmatpush1.msra.mxu0 0.0
        %890 = vmatprep.subr.mxu0 0.0
        %891 = vmatpush1.msra.mxu0 0.0
        %892 = vmatprep.subr.mxu0 0.0
        %893 = vmatpush1.msra.mxu0 0.0
        %894 = vmatprep.subr.mxu0 0.0
        %895 = vmatpush1.msra.mxu0 0.0
        %896 = vmatprep.subr.mxu0 0.0
        %897 = vmatpush1.msra.mxu0 0.0
        %898 = vmatprep.subr.mxu0 0.0
        %899 = vmatpush1.msra.mxu0 0.0
        %900 = vmatprep.subr.mxu0 0.0
        %901 = vmatpush1.msra.mxu0 0.0
        %902 = vmatprep.subr.mxu0 0.0
        %903 = vmatpush1.msra.mxu0 0.0
        %904 = vmatprep.subr.mxu0 0.0
        %905 = vmatpush1.msra.mxu0 0.0
        %906 = vmatprep.subr.mxu0 0.0
        %907 = vmatpush1.msra.mxu0 0.0
        %908 = vmatprep.subr.mxu0 0.0
        %909 = vmatpush1.msra.mxu0 0.0
        %910 = vmatprep.subr.mxu0 0.0
        %911 = vmatpush1.msra.mxu0 0.0
        %912 = vmatprep.subr.mxu0 0.0
        %913 = vmatpush1.msra.mxu0 0.0
        %914 = vmatprep.subr.mxu0 0.0
        %915 = vmatpush1.msra.mxu0 0.0
        %916 = vmatprep.subr.mxu0 0.0
        %917 = vmatpush1.msra.mxu0 0.0
        %918 = vmatprep.subr.mxu0 0.0
        %919 = vmatpush1.msra.mxu0 0.0
        %920 = vmatprep.subr.mxu0 0.0
        %921 = vmatpush1.msra.mxu0 0.0
        %922 = vmatprep.mubr.f32.mxu0 0.0
        %923 = vmatmul.mubr.f32.gmra.mrb[0].mxu0 %v856
        %v924 = vpop.f32.mrb[0].mxu0
        %v925 = vadd.f32 0.0, %v924
        %v926 = vpop.f32.mrb[0].mxu0
        %927 = vdwg.mxu0
        %v928 = vmul.f32 %v925, 28.284271
        %v929 = vld [vmem:[#allocation2] sm:$0xff]
        %v930 = vld [vmem:[#allocation2 + $0x8] sm:$0xff]
        %vm931 = vcmask 64512
        %v933 = vsel %vm931, %v928, 0
        %v936 = vsel %vm931, %v929, 0
        %v939 = vsel %vm931, %v930, 0
        %941 = vmatprep.subr.mxu0 0.0
        %942 = vmatpush1.xpose.msra.mxu0 %v936
        %943 = vmatprep.subr.mxu0 0.0
        %944 = vmatpush1.xpose.msra.mxu0 %v939
        %945 = vmatprep.subr.mxu0 0.0
        %946 = vmatpush1.xpose.msra.mxu0 0.0
        %947 = vmatprep.subr.mxu0 0.0
        %948 = vmatpush1.xpose.msra.mxu0 0.0
        %949 = vmatprep.subr.mxu0 0.0
        %950 = vmatpush1.xpose.msra.mxu0 0.0
        %951 = vmatprep.subr.mxu0 0.0
        %952 = vmatpush1.xpose.msra.mxu0 0.0
        %953 = vmatprep.subr.mxu0 0.0
        %954 = vmatpush1.xpose.msra.mxu0 0.0
        %955 = vmatprep.subr.mxu0 0.0
        %956 = vmatpush1.xpose.msra.mxu0 0.0
        %957 = vmatprep.subr.mxu0 0.0
        %958 = vmatpush1.xpose.msra.mxu0 0.0
        %959 = vmatprep.subr.mxu0 0.0
        %960 = vmatpush1.xpose.msra.mxu0 0.0
        %961 = vmatprep.subr.mxu0 0.0
        %962 = vmatpush1.xpose.msra.mxu0 0.0
        %963 = vmatprep.subr.mxu0 0.0
        %964 = vmatpush1.xpose.msra.mxu0 0.0
        %965 = vmatprep.subr.mxu0 0.0
        %966 = vmatpush1.xpose.msra.mxu0 0.0
        %967 = vmatprep.subr.mxu0 0.0
        %968 = vmatpush1.xpose.msra.mxu0 0.0
        %969 = vmatprep.subr.mxu0 0.0
        %970 = vmatpush1.xpose.msra.mxu0 0.0
        %971 = vmatprep.subr.mxu0 0.0
        %972 = vmatpush1.xpose.msra.mxu0 0.0
        %973 = vmatprep.subr.mxu0 0.0
        %974 = vmatpush1.xpose.msra.mxu0 0.0
        %975 = vmatprep.subr.mxu0 0.0
        %976 = vmatpush1.xpose.msra.mxu0 0.0
        %977 = vmatprep.subr.mxu0 0.0
        %978 = vmatpush1.xpose.msra.mxu0 0.0
        %979 = vmatprep.subr.mxu0 0.0
        %980 = vmatpush1.xpose.msra.mxu0 0.0
        %981 = vmatprep.subr.mxu0 0.0
        %982 = vmatpush1.xpose.msra.mxu0 0.0
        %983 = vmatprep.subr.mxu0 0.0
        %984 = vmatpush1.xpose.msra.mxu0 0.0
        %985 = vmatprep.subr.mxu0 0.0
        %986 = vmatpush1.xpose.msra.mxu0 0.0
        %987 = vmatprep.subr.mxu0 0.0
        %988 = vmatpush1.xpose.msra.mxu0 0.0
        %989 = vmatprep.subr.mxu0 0.0
        %990 = vmatpush1.xpose.msra.mxu0 0.0
        %991 = vmatprep.subr.mxu0 0.0
        %992 = vmatpush1.xpose.msra.mxu0 0.0
        %993 = vmatprep.subr.mxu0 0.0
        %994 = vmatpush1.xpose.msra.mxu0 0.0
        %995 = vmatprep.subr.mxu0 0.0
        %996 = vmatpush1.xpose.msra.mxu0 0.0
        %997 = vmatprep.subr.mxu0 0.0
        %998 = vmatpush1.xpose.msra.mxu0 0.0
        %999 = vmatprep.subr.mxu0 0.0
        %1000 = vmatpush1.xpose.msra.mxu0 0.0
        %1001 = vmatprep.subr.mxu0 0.0
        %1002 = vmatpush1.xpose.msra.mxu0 0.0
        %1003 = vmatprep.subr.mxu0 0.0
        %1004 = vmatpush1.xpose.msra.mxu0 0.0
        %1005 = vmatprep.mubr.f32.mxu0 0.0
        %1006 = vmatmul.mubr.f32.gmra.mrb[0].mxu0 %v933
        %v1007 = vpop.f32.mrb[0].mxu0
        %v1008 = vadd.f32 0.0, %v1007
        %v1009 = vpop.f32.mrb[0].mxu0
        %1010 = vdwg.mxu0
        %vm1011 = vcmask 130048
        %v1012 = vsel %vm1011, %v1008, -inf
        %1013 = vmax.xlane.f32.xlu0 %v1012
        %v1014 = vpop.xlane.xlu0 %1013
        %v1015 = vsub.f32 %v1008, %v1014
        %v1016 = vmul.f32 %v1015, 1.442695
        %v1017 = vpow.pop %v1016
        %v1018 = vsel %vm1011, %v1017, 0.0
        %1019 = vadd.xlane.f32.xlu0 %v1018
        %v1020 = vpop.xlane.xlu0 %1019
        %v1021 = vrcp.pop %v1020
        %v1022 = vmul.f32 %v1017, %v1021
        %1023 = vst.msk [vmem:[%s379] sm:$0xff] %vm1011, %v1022
        %v1024 = vld [vmem:[#allocation3] sm:$0xff]
        %v1025 = vld [vmem:[#allocation3 + $0x8] sm:$0xff]
        %v1026 = vld [vmem:[#allocation2] sm:$0xff]
        %v1027 = vld [vmem:[#allocation2 + $0x8] sm:$0xff]
        %1028 = vrot.lane.b32.xlu0 %v928, 120
        %v1029 = vpop.permute.xlu0 %1028
        %1032 = vrot.lane.b32.xlu0 %v1026, 120
        %v1033 = vpop.permute.xlu0 %1032
        %1034 = vrot.lane.b32.xlu0 %v1027, 120
        %v1035 = vpop.permute.xlu0 %1034
        %v1036 = vsel %vm931, %v1029, 0
        %v1038 = vsel %vm931, %v1033, 0
        %v1040 = vsel %vm931, %v1035, 0
        %1042 = vmatprep.subr.mxu0 0.0
        %1043 = vmatpush1.xpose.msra.mxu0 %v1038
        %1044 = vmatprep.subr.mxu0 0.0
        %1045 = vmatpush1.xpose.msra.mxu0 %v1040
        %1046 = vmatprep.subr.mxu0 0.0
        %1047 = vmatpush1.xpose.msra.mxu0 0.0
        %1048 = vmatprep.subr.mxu0 0.0
        %1049 = vmatpush1.xpose.msra.mxu0 0.0
        %1050 = vmatprep.subr.mxu0 0.0
        %1051 = vmatpush1.xpose.msra.mxu0 0.0
        %1052 = vmatprep.subr.mxu0 0.0
        %1053 = vmatpush1.xpose.msra.mxu0 0.0
        %1054 = vmatprep.subr.mxu0 0.0
        %1055 = vmatpush1.xpose.msra.mxu0 0.0
        %1056 = vmatprep.subr.mxu0 0.0
        %1057 = vmatpush1.xpose.msra.mxu0 0.0
        %1058 = vmatprep.subr.mxu0 0.0
        %1059 = vmatpush1.xpose.msra.mxu0 0.0
        %1060 = vmatprep.subr.mxu0 0.0
        %1061 = vmatpush1.xpose.msra.mxu0 0.0
        %1062 = vmatprep.subr.mxu0 0.0
        %1063 = vmatpush1.xpose.msra.mxu0 0.0
        %1064 = vmatprep.subr.mxu0 0.0
        %1065 = vmatpush1.xpose.msra.mxu0 0.0
        %1066 = vmatprep.subr.mxu0 0.0
        %1067 = vmatpush1.xpose.msra.mxu0 0.0
        %1068 = vmatprep.subr.mxu0 0.0
        %1069 = vmatpush1.xpose.msra.mxu0 0.0
        %1070 = vmatprep.subr.mxu0 0.0
        %1071 = vmatpush1.xpose.msra.mxu0 0.0
        %1072 = vmatprep.subr.mxu0 0.0
        %1073 = vmatpush1.xpose.msra.mxu0 0.0
        %1074 = vmatprep.subr.mxu0 0.0
        %1075 = vmatpush1.xpose.msra.mxu0 0.0
        %1076 = vmatprep.subr.mxu0 0.0
        %1077 = vmatpush1.xpose.msra.mxu0 0.0
        %1078 = vmatprep.subr.mxu0 0.0
        %1079 = vmatpush1.xpose.msra.mxu0 0.0
        %1080 = vmatprep.subr.mxu0 0.0
        %1081 = vmatpush1.xpose.msra.mxu0 0.0
        %1082 = vmatprep.subr.mxu0 0.0
        %1083 = vmatpush1.xpose.msra.mxu0 0.0
        %1084 = vmatprep.subr.mxu0 0.0
        %1085 = vmatpush1.xpose.msra.mxu0 0.0
        %1086 = vmatprep.subr.mxu0 0.0
        %1087 = vmatpush1.xpose.msra.mxu0 0.0
        %1088 = vmatprep.subr.mxu0 0.0
        %1089 = vmatpush1.xpose.msra.mxu0 0.0
        %1090 = vmatprep.subr.mxu0 0.0
        %1091 = vmatpush1.xpose.msra.mxu0 0.0
        %1092 = vmatprep.subr.mxu0 0.0
        %1093 = vmatpush1.xpose.msra.mxu0 0.0
        %1094 = vmatprep.subr.mxu0 0.0
        %1095 = vmatpush1.xpose.msra.mxu0 0.0
        %1096 = vmatprep.subr.mxu0 0.0
        %1097 = vmatpush1.xpose.msra.mxu0 0.0
        %1098 = vmatprep.subr.mxu0 0.0
        %1099 = vmatpush1.xpose.msra.mxu0 0.0
        %1100 = vmatprep.subr.mxu0 0.0
        %1101 = vmatpush1.xpose.msra.mxu0 0.0
        %1102 = vmatprep.subr.mxu0 0.0
        %1103 = vmatpush1.xpose.msra.mxu0 0.0
        %1104 = vmatprep.subr.mxu0 0.0
        %1105 = vmatpush1.xpose.msra.mxu0 0.0
        %1106 = vmatprep.mubr.f32.mxu0 0.0
        %1107 = vmatmul.mubr.f32.gmra.mrb[0].mxu0 %v1036
        %v1108 = vpop.f32.mrb[0].mxu0
        %v1109 = vadd.f32 0.0, %v1108
        %v1110 = vpop.f32.mrb[0].mxu0
        %1111 = vdwg.mxu0
        %v1112 = vsel %vm1011, %v1109, -inf
        %1113 = vmax.xlane.f32.xlu0 %v1112
        %v1114 = vpop.xlane.xlu0 %1113
        %v1115 = vsub.f32 %v1109, %v1114
        %v1116 = vmul.f32 %v1115, 1.442695
        %v1117 = vpow.pop %v1116
        %v1118 = vsel %vm1011, %v1117, 0.0
        %1119 = vadd.xlane.f32.xlu0 %v1118
        %v1120 = vpop.xlane.xlu0 %1119
        %v1121 = vrcp.pop %v1120
        %v1122 = vmul.f32 %v1117, %v1121
        %s1123 = scalar_lea.vmem %s379, 8 [#allocation14]
        %1124 = vst.msk [vmem:[%s1123] sm:$0xff] %vm1011, %v1122
        %v1125 = vld [vmem:[#allocation3] sm:$0xff]
        %v1126 = vld [vmem:[#allocation3 + $0x8] sm:$0xff]
        %1129 = vrot.lane.b32.xlu0 %v1125, 127
        %v1130 = vpop.permute.xlu0 %1129
        %1131 = vrot.lane.b32.xlu0 %v1126, 127
        %v1132 = vpop.permute.xlu0 %1131
        %v1136 = vsel %vm1011, %v1122, 0
        %1138 = vmatprep.subr.mxu0 0.0
        %1139 = vmatpush1.msra.mxu0 %v1130
        %1140 = vmatprep.subr.mxu0 0.0
        %1141 = vmatpush1.msra.mxu0 %v1132
        %1142 = vmatprep.subr.mxu0 0.0
        %1143 = vmatpush1.msra.mxu0 0.0
        %1144 = vmatprep.subr.mxu0 0.0
        %1145 = vmatpush1.msra.mxu0 0.0
        %1146 = vmatprep.subr.mxu0 0.0
        %1147 = vmatpush1.msra.mxu0 0.0
        %1148 = vmatprep.subr.mxu0 0.0
        %1149 = vmatpush1.msra.mxu0 0.0
        %1150 = vmatprep.subr.mxu0 0.0
        %1151 = vmatpush1.msra.mxu0 0.0
        %1152 = vmatprep.subr.mxu0 0.0
        %1153 = vmatpush1.msra.mxu0 0.0
        %1154 = vmatprep.subr.mxu0 0.0
        %1155 = vmatpush1.msra.mxu0 0.0
        %1156 = vmatprep.subr.mxu0 0.0
        %1157 = vmatpush1.msra.mxu0 0.0
        %1158 = vmatprep.subr.mxu0 0.0
        %1159 = vmatpush1.msra.mxu0 0.0
        %1160 = vmatprep.subr.mxu0 0.0
        %1161 = vmatpush1.msra.mxu0 0.0
        %1162 = vmatprep.subr.mxu0 0.0
        %1163 = vmatpush1.msra.mxu0 0.0
        %1164 = vmatprep.subr.mxu0 0.0
        %1165 = vmatpush1.msra.mxu0 0.0
        %1166 = vmatprep.subr.mxu0 0.0
        %1167 = vmatpush1.msra.mxu0 0.0
        %1168 = vmatprep.subr.mxu0 0.0
        %1169 = vmatpush1.msra.mxu0 0.0
        %1170 = vmatprep.subr.mxu0 0.0
        %1171 = vmatpush1.msra.mxu0 0.0
        %1172 = vmatprep.subr.mxu0 0.0
        %1173 = vmatpush1.msra.mxu0 0.0
        %1174 = vmatprep.subr.mxu0 0.0
        %1175 = vmatpush1.msra.mxu0 0.0
        %1176 = vmatprep.subr.mxu0 0.0
        %1177 = vmatpush1.msra.mxu0 0.0
        %1178 = vmatprep.subr.mxu0 0.0
        %1179 = vmatpush1.msra.mxu0 0.0
        %1180 = vmatprep.subr.mxu0 0.0
        %1181 = vmatpush1.msra.mxu0 0.0
        %1182 = vmatprep.subr.mxu0 0.0
        %1183 = vmatpush1.msra.mxu0 0.0
        %1184 = vmatprep.subr.mxu0 0.0
        %1185 = vmatpush1.msra.mxu0 0.0
        %1186 = vmatprep.subr.mxu0 0.0
        %1187 = vmatpush1.msra.mxu0 0.0
        %1188 = vmatprep.subr.mxu0 0.0
        %1189 = vmatpush1.msra.mxu0 0.0
        %1190 = vmatprep.subr.mxu0 0.0
        %1191 = vmatpush1.msra.mxu0 0.0
        %1192 = vmatprep.subr.mxu0 0.0
        %1193 = vmatpush1.msra.mxu0 0.0
        %1194 = vmatprep.subr.mxu0 0.0
        %1195 = vmatpush1.msra.mxu0 0.0
        %1196 = vmatprep.subr.mxu0 0.0
        %1197 = vmatpush1.msra.mxu0 0.0
        %1198 = vmatprep.subr.mxu0 0.0
        %1199 = vmatpush1.msra.mxu0 0.0
        %1200 = vmatprep.subr.mxu0 0.0
        %1201 = vmatpush1.msra.mxu0 0.0
        %1202 = vmatprep.mubr.f32.mxu0 0.0
        %1203 = vmatmul.mubr.f32.gmra.mrb[0].mxu0 %v1136
        %v1204 = vpop.f32.mrb[0].mxu0
        %v1205 = vadd.f32 0.0, %v1204
        %v1206 = vpop.f32.mrb[0].mxu0
        %1207 = vdwg.mxu0
        %v1209 = vsel %vm1011, %v1022, 0
        %1211 = vmatprep.subr.mxu0 0.0
        %1212 = vmatpush1.msra.mxu0 %v1024
        %1213 = vmatprep.subr.mxu0 0.0
        %1214 = vmatpush1.msra.mxu0 %v1025
        %1215 = vmatprep.subr.mxu0 0.0
        %1216 = vmatpush1.msra.mxu0 0.0
        %1217 = vmatprep.subr.mxu0 0.0
        %1218 = vmatpush1.msra.mxu0 0.0
        %1219 = vmatprep.subr.mxu0 0.0
        %1220 = vmatpush1.msra.mxu0 0.0
        %1221 = vmatprep.subr.mxu0 0.0
        %1222 = vmatpush1.msra.mxu0 0.0
        %1223 = vmatprep.subr.mxu0 0.0
        %1224 = vmatpush1.msra.mxu0 0.0
        %1225 = vmatprep.subr.mxu0 0.0
        %1226 = vmatpush1.msra.mxu0 0.0
        %1227 = vmatprep.subr.mxu0 0.0
        %1228 = vmatpush1.msra.mxu0 0.0
        %1229 = vmatprep.subr.mxu0 0.0
        %1230 = vmatpush1.msra.mxu0 0.0
        %1231 = vmatprep.subr.mxu0 0.0
        %1232 = vmatpush1.msra.mxu0 0.0
        %1233 = vmatprep.subr.mxu0 0.0
        %1234 = vmatpush1.msra.mxu0 0.0
        %1235 = vmatprep.subr.mxu0 0.0
        %1236 = vmatpush1.msra.mxu0 0.0
        %1237 = vmatprep.subr.mxu0 0.0
        %1238 = vmatpush1.msra.mxu0 0.0
        %1239 = vmatprep.subr.mxu0 0.0
        %1240 = vmatpush1.msra.mxu0 0.0
        %1241 = vmatprep.subr.mxu0 0.0
        %1242 = vmatpush1.msra.mxu0 0.0
        %1243 = vmatprep.subr.mxu0 0.0
        %1244 = vmatpush1.msra.mxu0 0.0
        %1245 = vmatprep.subr.mxu0 0.0
        %1246 = vmatpush1.msra.mxu0 0.0
        %1247 = vmatprep.subr.mxu0 0.0
        %1248 = vmatpush1.msra.mxu0 0.0
        %1249 = vmatprep.subr.mxu0 0.0
        %1250 = vmatpush1.msra.mxu0 0.0
        %1251 = vmatprep.subr.mxu0 0.0
        %1252 = vmatpush1.msra.mxu0 0.0
        %1253 = vmatprep.subr.mxu0 0.0
        %1254 = vmatpush1.msra.mxu0 0.0
        %1255 = vmatprep.subr.mxu0 0.0
        %1256 = vmatpush1.msra.mxu0 0.0
        %1257 = vmatprep.subr.mxu0 0.0
        %1258 = vmatpush1.msra.mxu0 0.0
        %1259 = vmatprep.subr.mxu0 0.0
        %1260 = vmatpush1.msra.mxu0 0.0
        %1261 = vmatprep.subr.mxu0 0.0
        %1262 = vmatpush1.msra.mxu0 0.0
        %1263 = vmatprep.subr.mxu0 0.0
        %1264 = vmatpush1.msra.mxu0 0.0
        %1265 = vmatprep.subr.mxu0 0.0
        %1266 = vmatpush1.msra.mxu0 0.0
        %1267 = vmatprep.subr.mxu0 0.0
        %1268 = vmatpush1.msra.mxu0 0.0
        %1269 = vmatprep.subr.mxu0 0.0
        %1270 = vmatpush1.msra.mxu0 0.0
        %1271 = vmatprep.subr.mxu0 0.0
        %1272 = vmatpush1.msra.mxu0 0.0
        %1273 = vmatprep.subr.mxu0 0.0
        %1274 = vmatpush1.msra.mxu0 0.0
        %1275 = vmatprep.mubr.f32.mxu0 0.0
        %1276 = vmatmul.mubr.f32.gmra.mrb[0].mxu0 %v1209
        %v1277 = vpop.f32.mrb[0].mxu0
        %v1278 = vadd.f32 %v1205, %v1277
        %v1279 = vpop.f32.mrb[0].mxu0
        %1280 = vdwg.mxu0
        %v1281 = vld [vmem:[#allocation2] sm:$0xff]
        %v1282 = vld [vmem:[#allocation2 + $0x8] sm:$0xff]
        %1283 = vrot.lane.b32.xlu0 %v928, 112
        %v1284 = vpop.permute.xlu0 %1283
        %1287 = vrot.lane.b32.xlu0 %v1281, 112
        %v1288 = vpop.permute.xlu0 %1287
        %1289 = vrot.lane.b32.xlu0 %v1282, 112
        %v1290 = vpop.permute.xlu0 %1289
        %v1291 = vsel %vm931, %v1284, 0
        %v1293 = vsel %vm931, %v1288, 0
        %v1295 = vsel %vm931, %v1290, 0
        %1297 = vmatprep.subr.mxu0 0.0
        %1298 = vmatpush1.xpose.msra.mxu0 %v1293
        %1299 = vmatprep.subr.mxu0 0.0
        %1300 = vmatpush1.xpose.msra.mxu0 %v1295
        %1301 = vmatprep.subr.mxu0 0.0
        %1302 = vmatpush1.xpose.msra.mxu0 0.0
        %1303 = vmatprep.subr.mxu0 0.0
        %1304 = vmatpush1.xpose.msra.mxu0 0.0
        %1305 = vmatprep.subr.mxu0 0.0
        %1306 = vmatpush1.xpose.msra.mxu0 0.0
        %1307 = vmatprep.subr.mxu0 0.0
        %1308 = vmatpush1.xpose.msra.mxu0 0.0
        %1309 = vmatprep.subr.mxu0 0.0
        %1310 = vmatpush1.xpose.msra.mxu0 0.0
        %1311 = vmatprep.subr.mxu0 0.0
        %1312 = vmatpush1.xpose.msra.mxu0 0.0
        %1313 = vmatprep.subr.mxu0 0.0
        %1314 = vmatpush1.xpose.msra.mxu0 0.0
        %1315 = vmatprep.subr.mxu0 0.0
        %1316 = vmatpush1.xpose.msra.mxu0 0.0
        %1317 = vmatprep.subr.mxu0 0.0
        %1318 = vmatpush1.xpose.msra.mxu0 0.0
        %1319 = vmatprep.subr.mxu0 0.0
        %1320 = vmatpush1.xpose.msra.mxu0 0.0
        %1321 = vmatprep.subr.mxu0 0.0
        %1322 = vmatpush1.xpose.msra.mxu0 0.0
        %1323 = vmatprep.subr.mxu0 0.0
        %1324 = vmatpush1.xpose.msra.mxu0 0.0
        %1325 = vmatprep.subr.mxu0 0.0
        %1326 = vmatpush1.xpose.msra.mxu0 0.0
        %1327 = vmatprep.subr.mxu0 0.0
        %1328 = vmatpush1.xpose.msra.mxu0 0.0
        %1329 = vmatprep.subr.mxu0 0.0
        %1330 = vmatpush1.xpose.msra.mxu0 0.0
        %1331 = vmatprep.subr.mxu0 0.0
        %1332 = vmatpush1.xpose.msra.mxu0 0.0
        %1333 = vmatprep.subr.mxu0 0.0
        %1334 = vmatpush1.xpose.msra.mxu0 0.0
        %1335 = vmatprep.subr.mxu0 0.0
        %1336 = vmatpush1.xpose.msra.mxu0 0.0
        %1337 = vmatprep.subr.mxu0 0.0
        %1338 = vmatpush1.xpose.msra.mxu0 0.0
        %1339 = vmatprep.subr.mxu0 0.0
        %1340 = vmatpush1.xpose.msra.mxu0 0.0
        %1341 = vmatprep.subr.mxu0 0.0
        %1342 = vmatpush1.xpose.msra.mxu0 0.0
        %1343 = vmatprep.subr.mxu0 0.0
        %1344 = vmatpush1.xpose.msra.mxu0 0.0
        %1345 = vmatprep.subr.mxu0 0.0
        %1346 = vmatpush1.xpose.msra.mxu0 0.0
        %1347 = vmatprep.subr.mxu0 0.0
        %1348 = vmatpush1.xpose.msra.mxu0 0.0
        %1349 = vmatprep.subr.mxu0 0.0
        %1350 = vmatpush1.xpose.msra.mxu0 0.0
        %1351 = vmatprep.subr.mxu0 0.0
        %1352 = vmatpush1.xpose.msra.mxu0 0.0
        %1353 = vmatprep.subr.mxu0 0.0
        %1354 = vmatpush1.xpose.msra.mxu0 0.0
        %1355 = vmatprep.subr.mxu0 0.0
        %1356 = vmatpush1.xpose.msra.mxu0 0.0
        %1357 = vmatprep.subr.mxu0 0.0
        %1358 = vmatpush1.xpose.msra.mxu0 0.0
        %1359 = vmatprep.subr.mxu0 0.0
        %1360 = vmatpush1.xpose.msra.mxu0 0.0
        %1361 = vmatprep.mubr.f32.mxu0 0.0
        %1362 = vmatmul.mubr.f32.gmra.mrb[0].mxu0 %v1291
        %v1363 = vpop.f32.mrb[0].mxu0
        %v1364 = vadd.f32 0.0, %v1363
        %v1365 = vpop.f32.mrb[0].mxu0
        %1366 = vdwg.mxu0
        %v1367 = vsel %vm1011, %v1364, -inf
        %1368 = vmax.xlane.f32.xlu0 %v1367
        %v1369 = vpop.xlane.xlu0 %1368
        %v1370 = vsub.f32 %v1364, %v1369
        %v1371 = vmul.f32 %v1370, 1.442695
        %v1372 = vpow.pop %v1371
        %v1373 = vsel %vm1011, %v1372, 0.0
        %1374 = vadd.xlane.f32.xlu0 %v1373
        %v1375 = vpop.xlane.xlu0 %1374
        %v1376 = vrcp.pop %v1375
        %v1377 = vmul.f32 %v1372, %v1376
        %s1378 = scalar_lea.vmem %s379, 16 [#allocation14]
        %1379 = vst.msk [vmem:[%s1378] sm:$0xff] %vm1011, %v1377
        %v1380 = vld [vmem:[#allocation3] sm:$0xff]
        %v1381 = vld [vmem:[#allocation3 + $0x8] sm:$0xff]
        %1384 = vrot.lane.b32.xlu0 %v1380, 126
        %v1385 = vpop.permute.xlu0 %1384
        %1386 = vrot.lane.b32.xlu0 %v1381, 126
        %v1387 = vpop.permute.xlu0 %1386
        %v1391 = vsel %vm1011, %v1377, 0
        %1393 = vmatprep.subr.mxu0 0.0
        %1394 = vmatpush1.msra.mxu0 %v1385
        %1395 = vmatprep.subr.mxu0 0.0
        %1396 = vmatpush1.msra.mxu0 %v1387
        %1397 = vmatprep.subr.mxu0 0.0
        %1398 = vmatpush1.msra.mxu0 0.0
        %1399 = vmatprep.subr.mxu0 0.0
        %1400 = vmatpush1.msra.mxu0 0.0
        %1401 = vmatprep.subr.mxu0 0.0
        %1402 = vmatpush1.msra.mxu0 0.0
        %1403 = vmatprep.subr.mxu0 0.0
        %1404 = vmatpush1.msra.mxu0 0.0
        %1405 = vmatprep.subr.mxu0 0.0
        %1406 = vmatpush1.msra.mxu0 0.0
        %1407 = vmatprep.subr.mxu0 0.0
        %1408 = vmatpush1.msra.mxu0 0.0
        %1409 = vmatprep.subr.mxu0 0.0
        %1410 = vmatpush1.msra.mxu0 0.0
        %1411 = vmatprep.subr.mxu0 0.0
        %1412 = vmatpush1.msra.mxu0 0.0
        %1413 = vmatprep.subr.mxu0 0.0
        %1414 = vmatpush1.msra.mxu0 0.0
        %1415 = vmatprep.subr.mxu0 0.0
        %1416 = vmatpush1.msra.mxu0 0.0
        %1417 = vmatprep.subr.mxu0 0.0
        %1418 = vmatpush1.msra.mxu0 0.0
        %1419 = vmatprep.subr.mxu0 0.0
        %1420 = vmatpush1.msra.mxu0 0.0
        %1421 = vmatprep.subr.mxu0 0.0
        %1422 = vmatpush1.msra.mxu0 0.0
        %1423 = vmatprep.subr.mxu0 0.0
        %1424 = vmatpush1.msra.mxu0 0.0
        %1425 = vmatprep.subr.mxu0 0.0
        %1426 = vmatpush1.msra.mxu0 0.0
        %1427 = vmatprep.subr.mxu0 0.0
        %1428 = vmatpush1.msra.mxu0 0.0
        %1429 = vmatprep.subr.mxu0 0.0
        %1430 = vmatpush1.msra.mxu0 0.0
        %1431 = vmatprep.subr.mxu0 0.0
        %1432 = vmatpush1.msra.mxu0 0.0
        %1433 = vmatprep.subr.mxu0 0.0
        %1434 = vmatpush1.msra.mxu0 0.0
        %1435 = vmatprep.subr.mxu0 0.0
        %1436 = vmatpush1.msra.mxu0 0.0
        %1437 = vmatprep.subr.mxu0 0.0
        %1438 = vmatpush1.msra.mxu0 0.0
        %1439 = vmatprep.subr.mxu0 0.0
        %1440 = vmatpush1.msra.mxu0 0.0
        %1441 = vmatprep.subr.mxu0 0.0
        %1442 = vmatpush1.msra.mxu0 0.0
        %1443 = vmatprep.subr.mxu0 0.0
        %1444 = vmatpush1.msra.mxu0 0.0
        %1445 = vmatprep.subr.mxu0 0.0
        %1446 = vmatpush1.msra.mxu0 0.0
        %1447 = vmatprep.subr.mxu0 0.0
        %1448 = vmatpush1.msra.mxu0 0.0
        %1449 = vmatprep.subr.mxu0 0.0
        %1450 = vmatpush1.msra.mxu0 0.0
        %1451 = vmatprep.subr.mxu0 0.0
        %1452 = vmatpush1.msra.mxu0 0.0
        %1453 = vmatprep.subr.mxu0 0.0
        %1454 = vmatpush1.msra.mxu0 0.0
        %1455 = vmatprep.subr.mxu0 0.0
        %1456 = vmatpush1.msra.mxu0 0.0
        %1457 = vmatprep.mubr.f32.mxu0 0.0
        %1458 = vmatmul.mubr.f32.gmra.mrb[0].mxu0 %v1391
        %v1459 = vpop.f32.mrb[0].mxu0
        %v1460 = vadd.f32 0.0, %v1459
        %v1461 = vpop.f32.mrb[0].mxu0
        %1462 = vdwg.mxu0
        %v1463 = vadd.f32 %v1278, %v1460
        %v1464 = vld [vmem:[#allocation2] sm:$0xff]
        %v1465 = vld [vmem:[#allocation2 + $0x8] sm:$0xff]
        %1466 = vrot.lane.b32.xlu0 %v928, 104
        %v1467 = vpop.permute.xlu0 %1466
        %1470 = vrot.lane.b32.xlu0 %v1464, 104
        %v1471 = vpop.permute.xlu0 %1470
        %1472 = vrot.lane.b32.xlu0 %v1465, 104
        %v1473 = vpop.permute.xlu0 %1472
        %v1474 = vsel %vm931, %v1467, 0
        %v1476 = vsel %vm931, %v1471, 0
        %v1478 = vsel %vm931, %v1473, 0
        %1480 = vmatprep.subr.mxu0 0.0
        %1481 = vmatpush1.xpose.msra.mxu0 %v1476
        %1482 = vmatprep.subr.mxu0 0.0
        %1483 = vmatpush1.xpose.msra.mxu0 %v1478
        %1484 = vmatprep.subr.mxu0 0.0
        %1485 = vmatpush1.xpose.msra.mxu0 0.0
        %1486 = vmatprep.subr.mxu0 0.0
        %1487 = vmatpush1.xpose.msra.mxu0 0.0
        %1488 = vmatprep.subr.mxu0 0.0
        %1489 = vmatpush1.xpose.msra.mxu0 0.0
        %1490 = vmatprep.subr.mxu0 0.0
        %1491 = vmatpush1.xpose.msra.mxu0 0.0
        %1492 = vmatprep.subr.mxu0 0.0
        %1493 = vmatpush1.xpose.msra.mxu0 0.0
        %1494 = vmatprep.subr.mxu0 0.0
        %1495 = vmatpush1.xpose.msra.mxu0 0.0
        %1496 = vmatprep.subr.mxu0 0.0
        %1497 = vmatpush1.xpose.msra.mxu0 0.0
        %1498 = vmatprep.subr.mxu0 0.0
        %1499 = vmatpush1.xpose.msra.mxu0 0.0
        %1500 = vmatprep.subr.mxu0 0.0
        %1501 = vmatpush1.xpose.msra.mxu0 0.0
        %1502 = vmatprep.subr.mxu0 0.0
        %1503 = vmatpush1.xpose.msra.mxu0 0.0
        %1504 = vmatprep.subr.mxu0 0.0
        %1505 = vmatpush1.xpose.msra.mxu0 0.0
        %1506 = vmatprep.subr.mxu0 0.0
        %1507 = vmatpush1.xpose.msra.mxu0 0.0
        %1508 = vmatprep.subr.mxu0 0.0
        %1509 = vmatpush1.xpose.msra.mxu0 0.0
        %1510 = vmatprep.subr.mxu0 0.0
        %1511 = vmatpush1.xpose.msra.mxu0 0.0
        %1512 = vmatprep.subr.mxu0 0.0
        %1513 = vmatpush1.xpose.msra.mxu0 0.0
        %1514 = vmatprep.subr.mxu0 0.0
        %1515 = vmatpush1.xpose.msra.mxu0 0.0
        %1516 = vmatprep.subr.mxu0 0.0
        %1517 = vmatpush1.xpose.msra.mxu0 0.0
        %1518 = vmatprep.subr.mxu0 0.0
        %1519 = vmatpush1.xpose.msra.mxu0 0.0
        %1520 = vmatprep.subr.mxu0 0.0
        %1521 = vmatpush1.xpose.msra.mxu0 0.0
        %1522 = vmatprep.subr.mxu0 0.0
        %1523 = vmatpush1.xpose.msra.mxu0 0.0
        %1524 = vmatprep.subr.mxu0 0.0
        %1525 = vmatpush1.xpose.msra.mxu0 0.0
        %1526 = vmatprep.subr.mxu0 0.0
        %1527 = vmatpush1.xpose.msra.mxu0 0.0
        %1528 = vmatprep.subr.mxu0 0.0
        %1529 = vmatpush1.xpose.msra.mxu0 0.0
        %1530 = vmatprep.subr.mxu0 0.0
        %1531 = vmatpush1.xpose.msra.mxu0 0.0
        %1532 = vmatprep.subr.mxu0 0.0
        %1533 = vmatpush1.xpose.msra.mxu0 0.0
        %1534 = vmatprep.subr.mxu0 0.0
        %1535 = vmatpush1.xpose.msra.mxu0 0.0
        %1536 = vmatprep.subr.mxu0 0.0
        %1537 = vmatpush1.xpose.msra.mxu0 0.0
        %1538 = vmatprep.subr.mxu0 0.0
        %1539 = vmatpush1.xpose.msra.mxu0 0.0
        %1540 = vmatprep.subr.mxu0 0.0
        %1541 = vmatpush1.xpose.msra.mxu0 0.0
        %1542 = vmatprep.subr.mxu0 0.0
        %1543 = vmatpush1.xpose.msra.mxu0 0.0
        %1544 = vmatprep.mubr.f32.mxu0 0.0
        %1545 = vmatmul.mubr.f32.gmra.mrb[0].mxu0 %v1474
        %v1546 = vpop.f32.mrb[0].mxu0
        %v1547 = vadd.f32 0.0, %v1546
        %v1548 = vpop.f32.mrb[0].mxu0
        %1549 = vdwg.mxu0
        %v1550 = vsel %vm1011, %v1547, -inf
        %1551 = vmax.xlane.f32.xlu0 %v1550
        %v1552 = vpop.xlane.xlu0 %1551
        %v1553 = vsub.f32 %v1547, %v1552
        %v1554 = vmul.f32 %v1553, 1.442695
        %v1555 = vpow.pop %v1554
        %v1556 = vsel %vm1011, %v1555, 0.0
        %1557 = vadd.xlane.f32.xlu0 %v1556
        %v1558 = vpop.xlane.xlu0 %1557
        %v1559 = vrcp.pop %v1558
        %v1560 = vmul.f32 %v1555, %v1559
        %s1561 = scalar_lea.vmem %s379, 24 [#allocation14]
        %1562 = vst.msk [vmem:[%s1561] sm:$0xff] %vm1011, %v1560
        %v1563 = vld [vmem:[#allocation3] sm:$0xff]
        %v1564 = vld [vmem:[#allocation3 + $0x8] sm:$0xff]
        %1567 = vrot.lane.b32.xlu0 %v1563, 125
        %v1568 = vpop.permute.xlu0 %1567
        %1569 = vrot.lane.b32.xlu0 %v1564, 125
        %v1570 = vpop.permute.xlu0 %1569
        %v1574 = vsel %vm1011, %v1560, 0
        %1576 = vmatprep.subr.mxu0 0.0
        %1577 = vmatpush1.msra.mxu0 %v1568
        %1578 = vmatprep.subr.mxu0 0.0
        %1579 = vmatpush1.msra.mxu0 %v1570
        %1580 = vmatprep.subr.mxu0 0.0
        %1581 = vmatpush1.msra.mxu0 0.0
        %1582 = vmatprep.subr.mxu0 0.0
        %1583 = vmatpush1.msra.mxu0 0.0
        %1584 = vmatprep.subr.mxu0 0.0
        %1585 = vmatpush1.msra.mxu0 0.0
        %1586 = vmatprep.subr.mxu0 0.0
        %1587 = vmatpush1.msra.mxu0 0.0
        %1588 = vmatprep.subr.mxu0 0.0
        %1589 = vmatpush1.msra.mxu0 0.0
        %1590 = vmatprep.subr.mxu0 0.0
        %1591 = vmatpush1.msra.mxu0 0.0
        %1592 = vmatprep.subr.mxu0 0.0
        %1593 = vmatpush1.msra.mxu0 0.0
        %1594 = vmatprep.subr.mxu0 0.0
        %1595 = vmatpush1.msra.mxu0 0.0
        %1596 = vmatprep.subr.mxu0 0.0
        %1597 = vmatpush1.msra.mxu0 0.0
        %1598 = vmatprep.subr.mxu0 0.0
        %1599 = vmatpush1.msra.mxu0 0.0
        %1600 = vmatprep.subr.mxu0 0.0
        %1601 = vmatpush1.msra.mxu0 0.0
        %1602 = vmatprep.subr.mxu0 0.0
        %1603 = vmatpush1.msra.mxu0 0.0
        %1604 = vmatprep.subr.mxu0 0.0
        %1605 = vmatpush1.msra.mxu0 0.0
        %1606 = vmatprep.subr.mxu0 0.0
        %1607 = vmatpush1.msra.mxu0 0.0
        %1608 = vmatprep.subr.mxu0 0.0
        %1609 = vmatpush1.msra.mxu0 0.0
        %1610 = vmatprep.subr.mxu0 0.0
        %1611 = vmatpush1.msra.mxu0 0.0
        %1612 = vmatprep.subr.mxu0 0.0
        %1613 = vmatpush1.msra.mxu0 0.0
        %1614 = vmatprep.subr.mxu0 0.0
        %1615 = vmatpush1.msra.mxu0 0.0
        %1616 = vmatprep.subr.mxu0 0.0
        %1617 = vmatpush1.msra.mxu0 0.0
        %1618 = vmatprep.subr.mxu0 0.0
        %1619 = vmatpush1.msra.mxu0 0.0
        %1620 = vmatprep.subr.mxu0 0.0
        %1621 = vmatpush1.msra.mxu0 0.0
        %1622 = vmatprep.subr.mxu0 0.0
        %1623 = vmatpush1.msra.mxu0 0.0
        %1624 = vmatprep.subr.mxu0 0.0
        %1625 = vmatpush1.msra.mxu0 0.0
        %1626 = vmatprep.subr.mxu0 0.0
        %1627 = vmatpush1.msra.mxu0 0.0
        %1628 = vmatprep.subr.mxu0 0.0
        %1629 = vmatpush1.msra.mxu0 0.0
        %1630 = vmatprep.subr.mxu0 0.0
        %1631 = vmatpush1.msra.mxu0 0.0
        %1632 = vmatprep.subr.mxu0 0.0
        %1633 = vmatpush1.msra.mxu0 0.0
        %1634 = vmatprep.subr.mxu0 0.0
        %1635 = vmatpush1.msra.mxu0 0.0
        %1636 = vmatprep.subr.mxu0 0.0
        %1637 = vmatpush1.msra.mxu0 0.0
        %1638 = vmatprep.subr.mxu0 0.0
        %1639 = vmatpush1.msra.mxu0 0.0
        %1640 = vmatprep.mubr.f32.mxu0 0.0
        %1641 = vmatmul.mubr.f32.gmra.mrb[0].mxu0 %v1574
        %v1642 = vpop.f32.mrb[0].mxu0
        %v1643 = vadd.f32 0.0, %v1642
        %v1644 = vpop.f32.mrb[0].mxu0
        %1645 = vdwg.mxu0
        %v1646 = vadd.f32 %v1463, %v1643
        %vm1647 = vcmask 7168
        %1648 = vst.msk [vmem:[%s372] sm:$0xff] %vm1647, %v1646
        %s1649 = sand.u32 %s170, 1
        %s1650 = scalar_lea.sflag [#allocation6], %s1649
        %s1651 = sand.u32 %s170, 1
        %s1652 = smul.addr %s1651, 8
        %s1653 = scalar_lea.vmem [#allocation13], %s1652
        %s1654 = sand.u32 %s198, 1
        %s1655 = scalar_lea.sflag [#allocation15], %s1654
        %s1656 = sand.u32 %s198, 1
        %s1657 = smul.addr %s1656, 32
        %s1658 = scalar_lea.vmem [#allocation14], %s1657
        // Predicated region
        $region65: #{tpu_custom_call.1} parent=39 // pred_check
          %p1659 = pneg %p180
        $region66: #{tpu_custom_call.1} parent=39 // pred_check_branch
          %1661 = sbr.rel (%p1659) target = $region68
        $region67: #{tpu_custom_call.1} parent=39 // pred_region
          %s1663 = ssub.s32 128, 128
          %1664 = vsyncadd %s1650, %s1663
          %s1665 = sadd.s32 %s36, %s35
          %s1666 = smul.addr %s1665, 128
          %s1667 = scalar_lea.hbm %s5, %s1666
          %s1669 = sshll.u32 %s1653, 4
          %s1670 = int_to_ptr.vmem [resolvable:$true] %s1669
          %1672 = dma.vmem_to_hbm [thread:$0]  %s1670, 128, %s1667, %s1650
        $region68: #{tpu_custom_call.1} parent=39 // pred_fallthru
          _
        // Predicated region
        $region69: #{tpu_custom_call.1} parent=39 // pred_check
          %p1673 = pneg %p208
        $region70: #{tpu_custom_call.1} parent=39 // pred_check_branch
          %1675 = sbr.rel (%p1673) target = $region72
        $region71: #{tpu_custom_call.1} parent=39 // pred_region
          %s1677 = ssub.s32 512, 512
          %1678 = vsyncadd %s1655, %s1677
          %s1679 = smul.addr %s35, 4
          %s1680 = sadd.s32 %s36, %s1679
          %s1681 = smul.addr %s1680, 128
          %s1682 = scalar_lea.hbm %s6, %s1681
          %s1683 = sshll.u32 %s1658, 4
          %s1684 = int_to_ptr.vmem [resolvable:$true] %s1683
          %1689 = dma.vmem_to_hbm [thread:$0]  %s1684, 512, %s1682, %s1655, 128, 128, 8
        $region72: #{tpu_custom_call.1} parent=39 // pred_fallthru
          _
      $region40: #{tpu_custom_call.1} parent=5 // pred_fallthru
        _
      %p1690 = scmp.le.s32.totalorder 2, %s26
      // Predicated region
      $region73: #{tpu_custom_call.1} parent=5 // pred_check
        %p1691 = pneg %p1690
      $region74: #{tpu_custom_call.1} parent=5 // pred_check_branch
        %1693 = sbr.rel (%p1691) target = $region76
      $region75: #{tpu_custom_call.1} parent=5 // pred_region
        %s1694 = ssub.s32 %s26, 2
        // Predicated region
        $region77: #{tpu_custom_call.1} parent=75 // pred_check
          %p1695 = pneg %p186
        $region78: #{tpu_custom_call.1} parent=75 // pred_check_branch
          %1697 = sbr.rel (%p1695) target = $region80
        $region79: #{tpu_custom_call.1} parent=75 // pred_region
          %s1698 = sand.u32 %s171, 1
          %s1699 = scalar_lea.sflag [#allocation6], %s1698
          %s1700 = sand.u32 %s171, 1
          %s1701 = smul.addr %s1700, 8
          %s1702 = scalar_lea.vmem [#allocation13], %s1701
          %1703 = dma.done %s1699, 128
        $region80: #{tpu_custom_call.1} parent=75 // pred_fallthru
          _
        // Predicated region
        $region81: #{tpu_custom_call.1} parent=75 // pred_check
          %p1704 = pneg %p214
        $region82: #{tpu_custom_call.1} parent=75 // pred_check_branch
          %1706 = sbr.rel (%p1704) target = $region84
        $region83: #{tpu_custom_call.1} parent=75 // pred_region
          %s1707 = sand.u32 %s199, 1
          %s1708 = scalar_lea.sflag [#allocation15], %s1707
          %s1709 = sand.u32 %s199, 1
          %s1710 = smul.addr %s1709, 32
          %s1711 = scalar_lea.vmem [#allocation14], %s1710
          %1712 = dma.done %s1708, 512
        $region84: #{tpu_custom_call.1} parent=75 // pred_fallthru
          _
      $region76: #{tpu_custom_call.1} parent=5 // pred_fallthru
        _
    $region6: #{tpu_custom_call.1} parent=1 // loop_footer
      %s30 = sadd.s32 1, %s26
    $region7: #{tpu_custom_call.1} parent=1 // loop_footer_branch
      %25 = sbr.rel target = $region3
    $region8: #{tpu_custom_call.1} parent=1 // loop_exit
      _
    %1713 = vsyncpa [#allocation5], 1
    %s1714 = scalar_lea.sflag [#allocation5], 1
    %1715 = vsyncpa %s1714, 1
    %1716 = vsyncpa [#allocation8], 1
    %s1717 = scalar_lea.sflag [#allocation8], 1
    %1718 = vsyncpa %s1717, 1
    %1719 = vsyncpa [#allocation11], 1
    %1720 = vsyncpa [#allocation6], 1
    %s1721 = scalar_lea.sflag [#allocation6], 1
    %1722 = vsyncpa %s1721, 1
    %1723 = vsyncpa [#allocation15], 1
    %s1724 = scalar_lea.sflag [#allocation15], 1
    %1725 = vsyncpa %s1724, 1

</llo_original>
